<compile_context>
chip_gen: v6e
topology: v6e:2x2x1
jax: 0.10.0
libtpu: 0.0.40
codegen_flags: <defaults>
</compile_context>

<pallas_src>
import functools

import jax
import jax.numpy as jnp
from jax.experimental import pallas as pl
from jax.experimental.pallas import tpu as pltpu

# ---- module hyper-params (from model.py) ----
INPUT_DIM = 100
HIDDEN_DIM = 100
LAYER_DIM = 1          # single-layer LSTM (kernel implements exactly this)
OUTPUT_DIM = 1

_LANE = 128
_SUBLANE = 8


def _round_up(n, m):
    return ((n + m - 1) // m) * m


def _lstm_kernel(x_ref, wih_ref, whh_ref, b_ref, hlast_ref, gx_ref, *, hp):
    """Whole-sequence LSTM recurrence in one kernel invocation.

    x_ref    : (T, Bp, Dp)    zero-padded, time-major input (VMEM resident)
    wih_ref  : (Dp, 4*Hp)     fused input weights, gate order (i, f, o, g)
    whh_ref  : (Hp, 4*Hp)     fused recurrent weights, gate order (i, f, o, g)
    b_ref    : (1, 4*Hp)      fused combined bias (b_ih + b_hh)
    hlast_ref: (Bp, Hp)       output: hidden state after the last timestep
    gx_ref   : (T, Bp, 4*Hp)  VMEM scratch: precomputed x @ W_ih + b for all t
    """
    T, Bp, Dp = x_ref.shape
    G = 4 * hp

    # ---- prologue: hoist the input projection off the serial dependency chain ----
    # One (T*Bp, Dp) x (Dp, 4*Hp) MXU matmul instead of T tiny per-step ones; the bias
    # add is folded in here so the loop body never re-broadcasts it.
    x_all = x_ref[...].reshape(T * Bp, Dp)
    gx = jnp.dot(x_all, wih_ref[...], preferred_element_type=jnp.float32) + b_ref[...]
    gx_ref[...] = gx.reshape(T, Bp, G)

    h0 = jnp.zeros((Bp, hp), jnp.float32)
    c0 = jnp.zeros((Bp, hp), jnp.float32)

    def step(t, carry):
        h, c = carry
        # Single fused MXU dot per timestep on the serial path.
        gates = gx_ref[t] + jnp.dot(h, whh_ref[...],
                                    preferred_element_type=jnp.float32)
        sig = jax.nn.sigmoid(gates[:, : 3 * hp])   # (i, f, o) in one contiguous slab
        i_g = sig[:, :hp]
        f_g = sig[:, hp: 2 * hp]
        o_g = sig[:, 2 * hp: 3 * hp]
        g_g = jnp.tanh(gates[:, 3 * hp:])          # g gate (tanh) in its own slab
        c_new = f_g * c + i_g * g_g
        h_new = o_g * jnp.tanh(c_new)
        return (h_new, c_new)

    h_last, _ = jax.lax.fori_loop(0, T, step, (h0, c0), unroll=True)
    hlast_ref[...] = h_last


def _pack_params(w_ih, w_hh, bias, dp, hp):
    """Fuse per-gate (i, f, g, o) params into the lane-padded (i, f, o, g) layout."""
    order = (0, 1, 3, 2)  # (i, f, o, g): sigmoid gates contiguous, tanh gate last

    def pad2(w, r_to, c_to):
        return jnp.pad(w, ((0, r_to - w.shape[0]), (0, c_to - w.shape[1])))

    wih_f = jnp.concatenate([pad2(w_ih[k], dp, hp) for k in order], axis=1)  # (Dp, 4Hp)
    whh_f = jnp.concatenate([pad2(w_hh[k], hp, hp) for k in order], axis=1)  # (Hp, 4Hp)
    b_f = jnp.concatenate([pad2(bias[k], 1, hp) for k in order], axis=1)     # (1, 4Hp)
    return wih_f, whh_f, b_f


@jax.jit
def lstm_model_forward(x, w_ih, w_hh, bias, w_fc, b_fc):
    """x: (B, T, D) float32.  Returns (B, OUTPUT_DIM), matching the PyTorch forward."""
    B, T, D = x.shape
    H = w_hh.shape[-1]
    dp = _round_up(D, _LANE)
    hp = _round_up(H, _LANE)
    bp = _round_up(B, _SUBLANE)

    wih_f, whh_f, b_f = _pack_params(w_ih, w_hh, bias, dp, hp)
    x_p = jnp.pad(x, ((0, bp - B), (0, 0), (0, dp - D)))
    x_tm = jnp.transpose(x_p, (1, 0, 2))            # (T, Bp, Dp) time-major

    h_last = pl.pallas_call(
        functools.partial(_lstm_kernel, hp=hp),
        out_shape=jax.ShapeDtypeStruct((bp, hp), jnp.float32),
        in_specs=[
            pl.BlockSpec(memory_space=pltpu.MemorySpace.VMEM),  # x (whole seq, resident)
            pl.BlockSpec(memory_space=pltpu.MemorySpace.VMEM),  # W_ih fused
            pl.BlockSpec(memory_space=pltpu.MemorySpace.VMEM),  # W_hh fused
            pl.BlockSpec(memory_space=pltpu.MemorySpace.VMEM),  # bias fused
        ],
        out_specs=pl.BlockSpec(memory_space=pltpu.MemorySpace.VMEM),
        scratch_shapes=[pltpu.VMEM((T, bp, 4 * hp), jnp.float32)],  # precomputed x-gates
    )(x_tm, wih_f, whh_f, b_f)

    # Tiny H->1 Linear on the last hidden state done in XLA: keeps the kernel output
    # lane-dense (Bp, Hp) instead of a masked O=1 store / N=1 MXU pass.
    return h_last[:B, :H] @ w_fc + b_fc


def _init_params(key, input_dim, hidden_dim, output_dim):
    """Deterministic params mirroring PyTorch's default U(-1/sqrt(H), 1/sqrt(H)) init.

    Gate order matches PyTorch nn.LSTM: (i, f, g, o).  Weights are stored pre-transposed
    so the math is x @ W (no in-kernel transpose).
    """
    ks = jax.random.split(key, 6)
    bound = 1.0 / jnp.sqrt(hidden_dim)

    def u(k, shape):
        return jax.random.uniform(k, shape, jnp.float32, -bound, bound)

    w_ih = u(ks[0], (4, input_dim, hidden_dim))      # == W_ih^T per gate
    w_hh = u(ks[1], (4, hidden_dim, hidden_dim))     # == W_hh^T per gate
    b_ih = u(ks[2], (4, 1, hidden_dim))
    b_hh = u(ks[3], (4, 1, hidden_dim))
    bias = b_ih + b_hh                               # PyTorch adds both biases
    w_fc = u(ks[4], (hidden_dim, output_dim))        # Linear weight^T
    b_fc = u(ks[5], (1, output_dim))
    return w_ih, w_hh, bias, w_fc, b_fc


def _reference_forward(x, w_ih, w_hh, bias, w_fc, b_fc):
    """Pure-JAX reference of the same LSTM forward (for a correctness check)."""
    B, T, D = x.shape
    H = w_hh.shape[-1]
    h = jnp.zeros((B, H), jnp.float32)
    c = jnp.zeros((B, H), jnp.float32)

    def step(carry, x_t):
        h, c = carry
        g = [x_t @ w_ih[k] + h @ w_hh[k] + bias[k] for k in range(4)]
        i = jax.nn.sigmoid(g[0]); f = jax.nn.sigmoid(g[1])
        gg = jnp.tanh(g[2]);      o = jax.nn.sigmoid(g[3])
        c = f * c + i * gg
        h = o * jnp.tanh(c)
        return (h, c), None

    (h, c), _ = jax.lax.scan(step, (h, c), jnp.transpose(x, (1, 0, 2)))
    return h @ w_fc + b_fc


if __name__ == "__main__":
    key = jax.random.PRNGKey(0)
    k_x, k_p = jax.random.split(key)

    B, T = 2, 8
    x = jax.random.normal(k_x, (B, T, INPUT_DIM), jnp.float32)
    params = _init_params(k_p, INPUT_DIM, HIDDEN_DIM, OUTPUT_DIM)

    out = lstm_model_forward(x, *params)
    out = jax.block_until_ready(out)

    ref = _reference_forward(x, *params)
    assert out.shape == (B, OUTPUT_DIM)
    assert jnp.allclose(out, ref, atol=1e-4, rtol=1e-4), (out, ref)

    print("KERNEL_OK")
</pallas_src>

<mosaic_0001>
module attributes {stable_mosaic.version = 11 : i64} {
  func.func @_lstm_kernel(%arg0: memref<8x8x128xf32, #tpu.memory_space<vmem>>, %arg1: memref<128x512xf32, #tpu.memory_space<vmem>>, %arg2: memref<128x512xf32, #tpu.memory_space<vmem>>, %arg3: memref<1x512xf32, #tpu.memory_space<vmem>>, %arg4: memref<8x128xf32, #tpu.memory_space<vmem>>, %arg5: memref<8x8x512xf32, #tpu.memory_space<vmem>>) attributes {dimension_semantics = [], scalar_prefetch = 0 : i64, scratch_operands = 1 : i64, tpu.core_type = #tpu.core_type<tc>} {
    %c0 = arith.constant 0 : index
    %c0_0 = arith.constant 0 : index
    %c0_1 = arith.constant 0 : index
    %0 = vector.load %arg0[%c0, %c0_0, %c0_1] : memref<8x8x128xf32, #tpu.memory_space<vmem>>, vector<8x8x128xf32>
    %1 = vector.shape_cast %0 : vector<8x8x128xf32> to vector<64x128xf32>
    %c0_2 = arith.constant 0 : index
    %c0_3 = arith.constant 0 : index
    %2 = vector.load %arg1[%c0_2, %c0_3] : memref<128x512xf32, #tpu.memory_space<vmem>>, vector<128x512xf32>
    %cst = arith.constant dense<0.000000e+00> : vector<64x512xf32>
    %3 = tpu.matmul %1, %2, %cst {dimension_numbers = #tpu.dot_dimension_numbers<[1], [0], [0], [1], [0, 0, 1, 1], [], []>} : vector<64x128xf32>, vector<128x512xf32>, vector<64x512xf32> -> vector<64x512xf32>
    %c0_4 = arith.constant 0 : index
    %c0_5 = arith.constant 0 : index
    %4 = vector.load %arg3[%c0_4, %c0_5] : memref<1x512xf32, #tpu.memory_space<vmem>>, vector<1x512xf32>
    %5 = vector.broadcast %4 : vector<1x512xf32> to vector<64x512xf32>
    %6 = arith.addf %3, %5 : vector<64x512xf32>
    %7 = vector.shape_cast %6 : vector<64x512xf32> to vector<8x8x512xf32>
    %c0_6 = arith.constant 0 : index
    %c0_7 = arith.constant 0 : index
    %c0_8 = arith.constant 0 : index
    %8 = vector.load %arg5[%c0_6, %c0_7, %c0_8] : memref<8x8x512xf32, #tpu.memory_space<vmem>>, vector<8x8x512xf32>
    tpu.vector_store %arg5[%c0_6, %c0_7, %c0_8], %7 {strides = array<i32>} : memref<8x8x512xf32, #tpu.memory_space<vmem>>, vector<8x8x512xf32>,
    %cst_9 = arith.constant 0.000000e+00 : f32
    %9 = vector.broadcast %cst_9 : f32 to vector<8x128xf32>
    %cst_10 = arith.constant 0.000000e+00 : f32
    %10 = vector.broadcast %cst_10 : f32 to vector<8x128xf32>
    %c0_i32 = arith.constant 0 : i32
    %11 = arith.index_cast %c0_i32 : i32 to index
    %c0_11 = arith.constant 0 : index
    %c0_12 = arith.constant 0 : index
    %12 = vector.load %arg5[%11, %c0_11, %c0_12] : memref<8x8x512xf32, #tpu.memory_space<vmem>>, vector<1x8x512xf32>
    %13 = vector.shape_cast %12 : vector<1x8x512xf32> to vector<8x512xf32>
    %c0_13 = arith.constant 0 : index
    %c0_14 = arith.constant 0 : index
    %14 = vector.load %arg2[%c0_13, %c0_14] : memref<128x512xf32, #tpu.memory_space<vmem>>, vector<128x512xf32>
    %cst_15 = arith.constant dense<0.000000e+00> : vector<8x512xf32>
    %15 = tpu.matmul %9, %14, %cst_15 {dimension_numbers = #tpu.dot_dimension_numbers<[1], [0], [0], [1], [0, 0, 1, 1], [], []>} : vector<8x128xf32>, vector<128x512xf32>, vector<8x512xf32> -> vector<8x512xf32>
    %16 = arith.addf %13, %15 : vector<8x512xf32>
    %17 = vector.extract_strided_slice %16 {offsets = [0, 0], sizes = [8, 384], strides = [1, 1]} : vector<8x512xf32> to vector<8x384xf32>
    %18 = arith.negf %17 : vector<8x384xf32>
    %19 = math.exp %18 : vector<8x384xf32>
    %cst_16 = arith.constant 1.000000e+00 : f32
    %20 = vector.broadcast %cst_16 : f32 to vector<8x384xf32>
    %21 = arith.addf %20, %19 : vector<8x384xf32>
    %22 = arith.divf %20, %21 : vector<8x384xf32>
    %23 = vector.extract_strided_slice %22 {offsets = [0, 0], sizes = [8, 128], strides = [1, 1]} : vector<8x384xf32> to vector<8x128xf32>
    %24 = vector.extract_strided_slice %22 {offsets = [0, 128], sizes = [8, 128], strides = [1, 1]} : vector<8x384xf32> to vector<8x128xf32>
    %25 = vector.extract_strided_slice %22 {offsets = [0, 256], sizes = [8, 128], strides = [1, 1]} : vector<8x384xf32> to vector<8x128xf32>
    %26 = vector.extract_strided_slice %16 {offsets = [0, 384], sizes = [8, 128], strides = [1, 1]} : vector<8x512xf32> to vector<8x128xf32>
    %27 = math.tanh %26 : vector<8x128xf32>
    %28 = arith.mulf %24, %10 : vector<8x128xf32>
    %29 = arith.mulf %23, %27 : vector<8x128xf32>
    %30 = arith.addf %28, %29 : vector<8x128xf32>
    %31 = math.tanh %30 : vector<8x128xf32>
    %32 = arith.mulf %25, %31 : vector<8x128xf32>
    %c1_i32 = arith.constant 1 : i32
    %33 = arith.index_cast %c1_i32 : i32 to index
    %c0_17 = arith.constant 0 : index
    %c0_18 = arith.constant 0 : index
    %34 = vector.load %arg5[%33, %c0_17, %c0_18] : memref<8x8x512xf32, #tpu.memory_space<vmem>>, vector<1x8x512xf32>
    %35 = vector.shape_cast %34 : vector<1x8x512xf32> to vector<8x512xf32>
    %c0_19 = arith.constant 0 : index
    %c0_20 = arith.constant 0 : index
    %36 = vector.load %arg2[%c0_19, %c0_20] : memref<128x512xf32, #tpu.memory_space<vmem>>, vector<128x512xf32>
    %cst_21 = arith.constant dense<0.000000e+00> : vector<8x512xf32>
    %37 = tpu.matmul %32, %36, %cst_21 {dimension_numbers = #tpu.dot_dimension_numbers<[1], [0], [0], [1], [0, 0, 1, 1], [], []>} : vector<8x128xf32>, vector<128x512xf32>, vector<8x512xf32> -> vector<8x512xf32>
    %38 = arith.addf %35, %37 : vector<8x512xf32>
    %39 = vector.extract_strided_slice %38 {offsets = [0, 0], sizes = [8, 384], strides = [1, 1]} : vector<8x512xf32> to vector<8x384xf32>
    %40 = arith.negf %39 : vector<8x384xf32>
    %41 = math.exp %40 : vector<8x384xf32>
    %cst_22 = arith.constant 1.000000e+00 : f32
    %42 = vector.broadcast %cst_22 : f32 to vector<8x384xf32>
    %43 = arith.addf %42, %41 : vector<8x384xf32>
    %44 = arith.divf %42, %43 : vector<8x384xf32>
    %45 = vector.extract_strided_slice %44 {offsets = [0, 0], sizes = [8, 128], strides = [1, 1]} : vector<8x384xf32> to vector<8x128xf32>
    %46 = vector.extract_strided_slice %44 {offsets = [0, 128], sizes = [8, 128], strides = [1, 1]} : vector<8x384xf32> to vector<8x128xf32>
    %47 = vector.extract_strided_slice %44 {offsets = [0, 256], sizes = [8, 128], strides = [1, 1]} : vector<8x384xf32> to vector<8x128xf32>
    %48 = vector.extract_strided_slice %38 {offsets = [0, 384], sizes = [8, 128], strides = [1, 1]} : vector<8x512xf32> to vector<8x128xf32>
    %49 = math.tanh %48 : vector<8x128xf32>
    %50 = arith.mulf %46, %30 : vector<8x128xf32>
    %51 = arith.mulf %45, %49 : vector<8x128xf32>
    %52 = arith.addf %50, %51 : vector<8x128xf32>
    %53 = math.tanh %52 : vector<8x128xf32>
    %54 = arith.mulf %47, %53 : vector<8x128xf32>
    %c2_i32 = arith.constant 2 : i32
    %55 = arith.index_cast %c2_i32 : i32 to index
    %c0_23 = arith.constant 0 : index
    %c0_24 = arith.constant 0 : index
    %56 = vector.load %arg5[%55, %c0_23, %c0_24] : memref<8x8x512xf32, #tpu.memory_space<vmem>>, vector<1x8x512xf32>
    %57 = vector.shape_cast %56 : vector<1x8x512xf32> to vector<8x512xf32>
    %c0_25 = arith.constant 0 : index
    %c0_26 = arith.constant 0 : index
    %58 = vector.load %arg2[%c0_25, %c0_26] : memref<128x512xf32, #tpu.memory_space<vmem>>, vector<128x512xf32>
    %cst_27 = arith.constant dense<0.000000e+00> : vector<8x512xf32>
    %59 = tpu.matmul %54, %58, %cst_27 {dimension_numbers = #tpu.dot_dimension_numbers<[1], [0], [0], [1], [0, 0, 1, 1], [], []>} : vector<8x128xf32>, vector<128x512xf32>, vector<8x512xf32> -> vector<8x512xf32>
    %60 = arith.addf %57, %59 : vector<8x512xf32>
    %61 = vector.extract_strided_slice %60 {offsets = [0, 0], sizes = [8, 384], strides = [1, 1]} : vector<8x512xf32> to vector<8x384xf32>
    %62 = arith.negf %61 : vector<8x384xf32>
    %63 = math.exp %62 : vector<8x384xf32>
    %cst_28 = arith.constant 1.000000e+00 : f32
    %64 = vector.broadcast %cst_28 : f32 to vector<8x384xf32>
    %65 = arith.addf %64, %63 : vector<8x384xf32>
    %66 = arith.divf %64, %65 : vector<8x384xf32>
    %67 = vector.extract_strided_slice %66 {offsets = [0, 0], sizes = [8, 128], strides = [1, 1]} : vector<8x384xf32> to vector<8x128xf32>
    %68 = vector.extract_strided_slice %66 {offsets = [0, 128], sizes = [8, 128], strides = [1, 1]} : vector<8x384xf32> to vector<8x128xf32>
    %69 = vector.extract_strided_slice %66 {offsets = [0, 256], sizes = [8, 128], strides = [1, 1]} : vector<8x384xf32> to vector<8x128xf32>
    %70 = vector.extract_strided_slice %60 {offsets = [0, 384], sizes = [8, 128], strides = [1, 1]} : vector<8x512xf32> to vector<8x128xf32>
    %71 = math.tanh %70 : vector<8x128xf32>
    %72 = arith.mulf %68, %52 : vector<8x128xf32>
    %73 = arith.mulf %67, %71 : vector<8x128xf32>
    %74 = arith.addf %72, %73 : vector<8x128xf32>
    %75 = math.tanh %74 : vector<8x128xf32>
    %76 = arith.mulf %69, %75 : vector<8x128xf32>
    %c3_i32 = arith.constant 3 : i32
    %77 = arith.index_cast %c3_i32 : i32 to index
    %c0_29 = arith.constant 0 : index
    %c0_30 = arith.constant 0 : index
    %78 = vector.load %arg5[%77, %c0_29, %c0_30] : memref<8x8x512xf32, #tpu.memory_space<vmem>>, vector<1x8x512xf32>
    %79 = vector.shape_cast %78 : vector<1x8x512xf32> to vector<8x512xf32>
    %c0_31 = arith.constant 0 : index
    %c0_32 = arith.constant 0 : index
    %80 = vector.load %arg2[%c0_31, %c0_32] : memref<128x512xf32, #tpu.memory_space<vmem>>, vector<128x512xf32>
    %cst_33 = arith.constant dense<0.000000e+00> : vector<8x512xf32>
    %81 = tpu.matmul %76, %80, %cst_33 {dimension_numbers = #tpu.dot_dimension_numbers<[1], [0], [0], [1], [0, 0, 1, 1], [], []>} : vector<8x128xf32>, vector<128x512xf32>, vector<8x512xf32> -> vector<8x512xf32>
    %82 = arith.addf %79, %81 : vector<8x512xf32>
    %83 = vector.extract_strided_slice %82 {offsets = [0, 0], sizes = [8, 384], strides = [1, 1]} : vector<8x512xf32> to vector<8x384xf32>
    %84 = arith.negf %83 : vector<8x384xf32>
    %85 = math.exp %84 : vector<8x384xf32>
    %cst_34 = arith.constant 1.000000e+00 : f32
    %86 = vector.broadcast %cst_34 : f32 to vector<8x384xf32>
    %87 = arith.addf %86, %85 : vector<8x384xf32>
    %88 = arith.divf %86, %87 : vector<8x384xf32>
    %89 = vector.extract_strided_slice %88 {offsets = [0, 0], sizes = [8, 128], strides = [1, 1]} : vector<8x384xf32> to vector<8x128xf32>
    %90 = vector.extract_strided_slice %88 {offsets = [0, 128], sizes = [8, 128], strides = [1, 1]} : vector<8x384xf32> to vector<8x128xf32>
    %91 = vector.extract_strided_slice %88 {offsets = [0, 256], sizes = [8, 128], strides = [1, 1]} : vector<8x384xf32> to vector<8x128xf32>
    %92 = vector.extract_strided_slice %82 {offsets = [0, 384], sizes = [8, 128], strides = [1, 1]} : vector<8x512xf32> to vector<8x128xf32>
    %93 = math.tanh %92 : vector<8x128xf32>
    %94 = arith.mulf %90, %74 : vector<8x128xf32>
    %95 = arith.mulf %89, %93 : vector<8x128xf32>
    %96 = arith.addf %94, %95 : vector<8x128xf32>
    %97 = math.tanh %96 : vector<8x128xf32>
    %98 = arith.mulf %91, %97 : vector<8x128xf32>
    %c4_i32 = arith.constant 4 : i32
    %99 = arith.index_cast %c4_i32 : i32 to index
    %c0_35 = arith.constant 0 : index
    %c0_36 = arith.constant 0 : index
    %100 = vector.load %arg5[%99, %c0_35, %c0_36] : memref<8x8x512xf32, #tpu.memory_space<vmem>>, vector<1x8x512xf32>
    %101 = vector.shape_cast %100 : vector<1x8x512xf32> to vector<8x512xf32>
    %c0_37 = arith.constant 0 : index
    %c0_38 = arith.constant 0 : index
    %102 = vector.load %arg2[%c0_37, %c0_38] : memref<128x512xf32, #tpu.memory_space<vmem>>, vector<128x512xf32>
    %cst_39 = arith.constant dense<0.000000e+00> : vector<8x512xf32>
    %103 = tpu.matmul %98, %102, %cst_39 {dimension_numbers = #tpu.dot_dimension_numbers<[1], [0], [0], [1], [0, 0, 1, 1], [], []>} : vector<8x128xf32>, vector<128x512xf32>, vector<8x512xf32> -> vector<8x512xf32>
    %104 = arith.addf %101, %103 : vector<8x512xf32>
    %105 = vector.extract_strided_slice %104 {offsets = [0, 0], sizes = [8, 384], strides = [1, 1]} : vector<8x512xf32> to vector<8x384xf32>
    %106 = arith.negf %105 : vector<8x384xf32>
    %107 = math.exp %106 : vector<8x384xf32>
    %cst_40 = arith.constant 1.000000e+00 : f32
    %108 = vector.broadcast %cst_40 : f32 to vector<8x384xf32>
    %109 = arith.addf %108, %107 : vector<8x384xf32>
    %110 = arith.divf %108, %109 : vector<8x384xf32>
    %111 = vector.extract_strided_slice %110 {offsets = [0, 0], sizes = [8, 128], strides = [1, 1]} : vector<8x384xf32> to vector<8x128xf32>
    %112 = vector.extract_strided_slice %110 {offsets = [0, 128], sizes = [8, 128], strides = [1, 1]} : vector<8x384xf32> to vector<8x128xf32>
    %113 = vector.extract_strided_slice %110 {offsets = [0, 256], sizes = [8, 128], strides = [1, 1]} : vector<8x384xf32> to vector<8x128xf32>
    %114 = vector.extract_strided_slice %104 {offsets = [0, 384], sizes = [8, 128], strides = [1, 1]} : vector<8x512xf32> to vector<8x128xf32>
    %115 = math.tanh %114 : vector<8x128xf32>
    %116 = arith.mulf %112, %96 : vector<8x128xf32>
    %117 = arith.mulf %111, %115 : vector<8x128xf32>
    %118 = arith.addf %116, %117 : vector<8x128xf32>
    %119 = math.tanh %118 : vector<8x128xf32>
    %120 = arith.mulf %113, %119 : vector<8x128xf32>
    %c5_i32 = arith.constant 5 : i32
    %121 = arith.index_cast %c5_i32 : i32 to index
    %c0_41 = arith.constant 0 : index
    %c0_42 = arith.constant 0 : index
    %122 = vector.load %arg5[%121, %c0_41, %c0_42] : memref<8x8x512xf32, #tpu.memory_space<vmem>>, vector<1x8x512xf32>
    %123 = vector.shape_cast %122 : vector<1x8x512xf32> to vector<8x512xf32>
    %c0_43 = arith.constant 0 : index
    %c0_44 = arith.constant 0 : index
    %124 = vector.load %arg2[%c0_43, %c0_44] : memref<128x512xf32, #tpu.memory_space<vmem>>, vector<128x512xf32>
    %cst_45 = arith.constant dense<0.000000e+00> : vector<8x512xf32>
    %125 = tpu.matmul %120, %124, %cst_45 {dimension_numbers = #tpu.dot_dimension_numbers<[1], [0], [0], [1], [0, 0, 1, 1], [], []>} : vector<8x128xf32>, vector<128x512xf32>, vector<8x512xf32> -> vector<8x512xf32>
    %126 = arith.addf %123, %125 : vector<8x512xf32>
    %127 = vector.extract_strided_slice %126 {offsets = [0, 0], sizes = [8, 384], strides = [1, 1]} : vector<8x512xf32> to vector<8x384xf32>
    %128 = arith.negf %127 : vector<8x384xf32>
    %129 = math.exp %128 : vector<8x384xf32>
    %cst_46 = arith.constant 1.000000e+00 : f32
    %130 = vector.broadcast %cst_46 : f32 to vector<8x384xf32>
    %131 = arith.addf %130, %129 : vector<8x384xf32>
    %132 = arith.divf %130, %131 : vector<8x384xf32>
    %133 = vector.extract_strided_slice %132 {offsets = [0, 0], sizes = [8, 128], strides = [1, 1]} : vector<8x384xf32> to vector<8x128xf32>
    %134 = vector.extract_strided_slice %132 {offsets = [0, 128], sizes = [8, 128], strides = [1, 1]} : vector<8x384xf32> to vector<8x128xf32>
    %135 = vector.extract_strided_slice %132 {offsets = [0, 256], sizes = [8, 128], strides = [1, 1]} : vector<8x384xf32> to vector<8x128xf32>
    %136 = vector.extract_strided_slice %126 {offsets = [0, 384], sizes = [8, 128], strides = [1, 1]} : vector<8x512xf32> to vector<8x128xf32>
    %137 = math.tanh %136 : vector<8x128xf32>
    %138 = arith.mulf %134, %118 : vector<8x128xf32>
    %139 = arith.mulf %133, %137 : vector<8x128xf32>
    %140 = arith.addf %138, %139 : vector<8x128xf32>
    %141 = math.tanh %140 : vector<8x128xf32>
    %142 = arith.mulf %135, %141 : vector<8x128xf32>
    %c6_i32 = arith.constant 6 : i32
    %143 = arith.index_cast %c6_i32 : i32 to index
    %c0_47 = arith.constant 0 : index
    %c0_48 = arith.constant 0 : index
    %144 = vector.load %arg5[%143, %c0_47, %c0_48] : memref<8x8x512xf32, #tpu.memory_space<vmem>>, vector<1x8x512xf32>
    %145 = vector.shape_cast %144 : vector<1x8x512xf32> to vector<8x512xf32>
    %c0_49 = arith.constant 0 : index
    %c0_50 = arith.constant 0 : index
    %146 = vector.load %arg2[%c0_49, %c0_50] : memref<128x512xf32, #tpu.memory_space<vmem>>, vector<128x512xf32>
    %cst_51 = arith.constant dense<0.000000e+00> : vector<8x512xf32>
    %147 = tpu.matmul %142, %146, %cst_51 {dimension_numbers = #tpu.dot_dimension_numbers<[1], [0], [0], [1], [0, 0, 1, 1], [], []>} : vector<8x128xf32>, vector<128x512xf32>, vector<8x512xf32> -> vector<8x512xf32>
    %148 = arith.addf %145, %147 : vector<8x512xf32>
    %149 = vector.extract_strided_slice %148 {offsets = [0, 0], sizes = [8, 384], strides = [1, 1]} : vector<8x512xf32> to vector<8x384xf32>
    %150 = arith.negf %149 : vector<8x384xf32>
    %151 = math.exp %150 : vector<8x384xf32>
    %cst_52 = arith.constant 1.000000e+00 : f32
    %152 = vector.broadcast %cst_52 : f32 to vector<8x384xf32>
    %153 = arith.addf %152, %151 : vector<8x384xf32>
    %154 = arith.divf %152, %153 : vector<8x384xf32>
    %155 = vector.extract_strided_slice %154 {offsets = [0, 0], sizes = [8, 128], strides = [1, 1]} : vector<8x384xf32> to vector<8x128xf32>
    %156 = vector.extract_strided_slice %154 {offsets = [0, 128], sizes = [8, 128], strides = [1, 1]} : vector<8x384xf32> to vector<8x128xf32>
    %157 = vector.extract_strided_slice %154 {offsets = [0, 256], sizes = [8, 128], strides = [1, 1]} : vector<8x384xf32> to vector<8x128xf32>
    %158 = vector.extract_strided_slice %148 {offsets = [0, 384], sizes = [8, 128], strides = [1, 1]} : vector<8x512xf32> to vector<8x128xf32>
    %159 = math.tanh %158 : vector<8x128xf32>
    %160 = arith.mulf %156, %140 : vector<8x128xf32>
    %161 = arith.mulf %155, %159 : vector<8x128xf32>
    %162 = arith.addf %160, %161 : vector<8x128xf32>
    %163 = math.tanh %162 : vector<8x128xf32>
    %164 = arith.mulf %157, %163 : vector<8x128xf32>
    %c7_i32 = arith.constant 7 : i32
    %165 = arith.index_cast %c7_i32 : i32 to index
    %c0_53 = arith.constant 0 : index
    %c0_54 = arith.constant 0 : index
    %166 = vector.load %arg5[%165, %c0_53, %c0_54] : memref<8x8x512xf32, #tpu.memory_space<vmem>>, vector<1x8x512xf32>
    %167 = vector.shape_cast %166 : vector<1x8x512xf32> to vector<8x512xf32>
    %c0_55 = arith.constant 0 : index
    %c0_56 = arith.constant 0 : index
    %168 = vector.load %arg2[%c0_55, %c0_56] : memref<128x512xf32, #tpu.memory_space<vmem>>, vector<128x512xf32>
    %cst_57 = arith.constant dense<0.000000e+00> : vector<8x512xf32>
    %169 = tpu.matmul %164, %168, %cst_57 {dimension_numbers = #tpu.dot_dimension_numbers<[1], [0], [0], [1], [0, 0, 1, 1], [], []>} : vector<8x128xf32>, vector<128x512xf32>, vector<8x512xf32> -> vector<8x512xf32>
    %170 = arith.addf %167, %169 : vector<8x512xf32>
    %171 = vector.extract_strided_slice %170 {offsets = [0, 0], sizes = [8, 384], strides = [1, 1]} : vector<8x512xf32> to vector<8x384xf32>
    %172 = arith.negf %171 : vector<8x384xf32>
    %173 = math.exp %172 : vector<8x384xf32>
    %cst_58 = arith.constant 1.000000e+00 : f32
    %174 = vector.broadcast %cst_58 : f32 to vector<8x384xf32>
    %175 = arith.addf %174, %173 : vector<8x384xf32>
    %176 = arith.divf %174, %175 : vector<8x384xf32>
    %177 = vector.extract_strided_slice %176 {offsets = [0, 0], sizes = [8, 128], strides = [1, 1]} : vector<8x384xf32> to vector<8x128xf32>
    %178 = vector.extract_strided_slice %176 {offsets = [0, 128], sizes = [8, 128], strides = [1, 1]} : vector<8x384xf32> to vector<8x128xf32>
    %179 = vector.extract_strided_slice %176 {offsets = [0, 256], sizes = [8, 128], strides = [1, 1]} : vector<8x384xf32> to vector<8x128xf32>
    %180 = vector.extract_strided_slice %170 {offsets = [0, 384], sizes = [8, 128], strides = [1, 1]} : vector<8x512xf32> to vector<8x128xf32>
    %181 = math.tanh %180 : vector<8x128xf32>
    %182 = arith.mulf %178, %162 : vector<8x128xf32>
    %183 = arith.mulf %177, %181 : vector<8x128xf32>
    %184 = arith.addf %182, %183 : vector<8x128xf32>
    %185 = math.tanh %184 : vector<8x128xf32>
    %186 = arith.mulf %179, %185 : vector<8x128xf32>
    %c8_i32 = arith.constant 8 : i32
    %c0_59 = arith.constant 0 : index
    %c0_60 = arith.constant 0 : index
    %187 = vector.load %arg4[%c0_59, %c0_60] : memref<8x128xf32, #tpu.memory_space<vmem>>, vector<8x128xf32>
    tpu.vector_store %arg4[%c0_59, %c0_60], %186 {strides = array<i32>} : memref<8x128xf32, #tpu.memory_space<vmem>>, vector<8x128xf32>,
    return
  }
}

</mosaic_0001>

<llo_original>
// kernel: lstm_model_forward.1
$region0: #{lstm_model_forward.1}
  #allocation0 [shape = 'u32[]', space=smem, size = 0x4, offset = 0x4, fixed_abs, tag = 'smem constant byte address 0x4 - core index']
  #allocation1 [shape = 'u32[144,128]{1,0:T(1,128)}', space=vmem, size = 0x12000, scoped, tag = 'internal scratch']
  #allocation2 [shape = 'f32[8,8,512]{2,1,0:T(8,128)}', space=vmem, size = 0x20000, scoped, tag = 'scratch operand']
  %s0 = inlined_call_operand.vmem [shape: f32[8,8,128], index: 0, kind: input, shape index: {}]
  %s1 = inlined_call_operand.vmem [shape: f32[128,512], index: 1, kind: input, shape index: {}]
  %s2 = inlined_call_operand.vmem [shape: f32[128,512], index: 2, kind: input, shape index: {}]
  %s3 = inlined_call_operand.vmem [shape: f32[1,512], index: 3, kind: input, shape index: {}]
  %s4 = inlined_call_operand.vmem [shape: f32[8,128], index: 4, kind: output, shape index: {}]
  %s5 = sld [smem:[#allocation0]]
  $region26: #{lstm_model_forward.1} parent=0
    _
  %s7 = ssub.s32 1, %s5
  %s8 = scalar_select 0, %s7, %s5
  // Predicated region
  $region2: #{lstm_model_forward.1} parent=0 // pred_check
    _
  $region3: #{lstm_model_forward.1} parent=0 // pred_check_branch
    %10 = sbr.rel (0) target = $region5
  $region4: #{lstm_model_forward.1} parent=0 // pred_region
    _
  $region5: #{lstm_model_forward.1} parent=0 // pred_fallthru
    _
  // Predicated region
  $region6: #{lstm_model_forward.1} parent=0 // pred_check
    _
  $region7: #{lstm_model_forward.1} parent=0 // pred_check_branch
    %12 = sbr.rel (0) target = $region9
  $region8: #{lstm_model_forward.1} parent=0 // pred_region
    _
  $region9: #{lstm_model_forward.1} parent=0 // pred_fallthru
    _
  // Predicated region
  $region10: #{lstm_model_forward.1} parent=0 // pred_check
    _
  $region11: #{lstm_model_forward.1} parent=0 // pred_check_branch
    %14 = sbr.rel (0) target = $region13
  $region12: #{lstm_model_forward.1} parent=0 // pred_region
    _
  $region13: #{lstm_model_forward.1} parent=0 // pred_fallthru
    _
  // Predicated region
  $region14: #{lstm_model_forward.1} parent=0 // pred_check
    _
  $region15: #{lstm_model_forward.1} parent=0 // pred_check_branch
    %16 = sbr.rel (0) target = $region17
  $region16: #{lstm_model_forward.1} parent=0 // pred_region
    _
  $region17: #{lstm_model_forward.1} parent=0 // pred_fallthru
    _
  %v17 = vld [vmem:[%s0] sm:$0xff]
  %v18 = vld [vmem:[%s0 + $0x8] sm:$0xff]
  %v19 = vld [vmem:[%s0 + $0x10] sm:$0xff]
  %v20 = vld [vmem:[%s0 + $0x18] sm:$0xff]
  %v21 = vld [vmem:[%s0 + $0x20] sm:$0xff]
  %v22 = vld [vmem:[%s0 + $0x28] sm:$0xff]
  %v23 = vld [vmem:[%s0 + $0x30] sm:$0xff]
  %v24 = vld [vmem:[%s0 + $0x38] sm:$0xff]
  %v25 = vld [vmem:[%s1] sm:$0xff]
  %v26 = vld [vmem:[%s1 + $0x8] sm:$0xff]
  %v27 = vld [vmem:[%s1 + $0x10] sm:$0xff]
  %v28 = vld [vmem:[%s1 + $0x18] sm:$0xff]
  %v29 = vld [vmem:[%s1 + $0x20] sm:$0xff]
  %v30 = vld [vmem:[%s1 + $0x28] sm:$0xff]
  %v31 = vld [vmem:[%s1 + $0x30] sm:$0xff]
  %v32 = vld [vmem:[%s1 + $0x38] sm:$0xff]
  %v33 = vld [vmem:[%s1 + $0x40] sm:$0xff]
  %v34 = vld [vmem:[%s1 + $0x48] sm:$0xff]
  %v35 = vld [vmem:[%s1 + $0x50] sm:$0xff]
  %v36 = vld [vmem:[%s1 + $0x58] sm:$0xff]
  %v37 = vld [vmem:[%s1 + $0x60] sm:$0xff]
  %v38 = vld [vmem:[%s1 + $0x68] sm:$0xff]
  %v39 = vld [vmem:[%s1 + $0x70] sm:$0xff]
  %v40 = vld [vmem:[%s1 + $0x78] sm:$0xff]
  %v41 = vld [vmem:[%s1 + $0x80] sm:$0xff]
  %v42 = vld [vmem:[%s1 + $0x88] sm:$0xff]
  %v43 = vld [vmem:[%s1 + $0x90] sm:$0xff]
  %v44 = vld [vmem:[%s1 + $0x98] sm:$0xff]
  %v45 = vld [vmem:[%s1 + $0xa0] sm:$0xff]
  %v46 = vld [vmem:[%s1 + $0xa8] sm:$0xff]
  %v47 = vld [vmem:[%s1 + $0xb0] sm:$0xff]
  %v48 = vld [vmem:[%s1 + $0xb8] sm:$0xff]
  %v49 = vld [vmem:[%s1 + $0xc0] sm:$0xff]
  %v50 = vld [vmem:[%s1 + $0xc8] sm:$0xff]
  %v51 = vld [vmem:[%s1 + $0xd0] sm:$0xff]
  %v52 = vld [vmem:[%s1 + $0xd8] sm:$0xff]
  %v53 = vld [vmem:[%s1 + $0xe0] sm:$0xff]
  %v54 = vld [vmem:[%s1 + $0xe8] sm:$0xff]
  %v55 = vld [vmem:[%s1 + $0xf0] sm:$0xff]
  %v56 = vld [vmem:[%s1 + $0xf8] sm:$0xff]
  %v57 = vld [vmem:[%s1 + $0x100] sm:$0xff]
  %v58 = vld [vmem:[%s1 + $0x108] sm:$0xff]
  %v59 = vld [vmem:[%s1 + $0x110] sm:$0xff]
  %v60 = vld [vmem:[%s1 + $0x118] sm:$0xff]
  %v61 = vld [vmem:[%s1 + $0x120] sm:$0xff]
  %v62 = vld [vmem:[%s1 + $0x128] sm:$0xff]
  %v63 = vld [vmem:[%s1 + $0x130] sm:$0xff]
  %v64 = vld [vmem:[%s1 + $0x138] sm:$0xff]
  %v65 = vld [vmem:[%s1 + $0x140] sm:$0xff]
  %v66 = vld [vmem:[%s1 + $0x148] sm:$0xff]
  %v67 = vld [vmem:[%s1 + $0x150] sm:$0xff]
  %v68 = vld [vmem:[%s1 + $0x158] sm:$0xff]
  %v69 = vld [vmem:[%s1 + $0x160] sm:$0xff]
  %v70 = vld [vmem:[%s1 + $0x168] sm:$0xff]
  %v71 = vld [vmem:[%s1 + $0x170] sm:$0xff]
  %v72 = vld [vmem:[%s1 + $0x178] sm:$0xff]
  %v73 = vld [vmem:[%s1 + $0x180] sm:$0xff]
  %v74 = vld [vmem:[%s1 + $0x188] sm:$0xff]
  %v75 = vld [vmem:[%s1 + $0x190] sm:$0xff]
  %v76 = vld [vmem:[%s1 + $0x198] sm:$0xff]
  %v77 = vld [vmem:[%s1 + $0x1a0] sm:$0xff]
  %v78 = vld [vmem:[%s1 + $0x1a8] sm:$0xff]
  %v79 = vld [vmem:[%s1 + $0x1b0] sm:$0xff]
  %v80 = vld [vmem:[%s1 + $0x1b8] sm:$0xff]
  %v81 = vld [vmem:[%s1 + $0x1c0] sm:$0xff]
  %v82 = vld [vmem:[%s1 + $0x1c8] sm:$0xff]
  %v83 = vld [vmem:[%s1 + $0x1d0] sm:$0xff]
  %v84 = vld [vmem:[%s1 + $0x1d8] sm:$0xff]
  %v85 = vld [vmem:[%s1 + $0x1e0] sm:$0xff]
  %v86 = vld [vmem:[%s1 + $0x1e8] sm:$0xff]
  %v87 = vld [vmem:[%s1 + $0x1f0] sm:$0xff]
  %v88 = vld [vmem:[%s1 + $0x1f8] sm:$0xff]
  %v89 = vld [vmem:[%s3] sm:$0xf]
  %v91 = vlaneseq
  %v92 = vshrl.u32 %v91, 7
  %v93 = vsub.s32 0, %v92
  %v94 = vrot.slane %v89, %v93
  %v95 = vlaneseq
  %v96 = vshrl.u32 %v95, 7
  %v97 = vsub.s32 1, %v96
  %v98 = vrot.slane %v89, %v97
  %v99 = vlaneseq
  %v100 = vshrl.u32 %v99, 7
  %v101 = vsub.s32 2, %v100
  %v102 = vrot.slane %v89, %v101
  %v103 = vlaneseq
  %v104 = vshrl.u32 %v103, 7
  %v105 = vsub.s32 3, %v104
  %v106 = vrot.slane %v89, %v105
  %111 = vmatprep.subr.mxu0 %v86
  %112 = vmatpush1.msra.mxu0 %v85
  %113 = vmatprep.subr.mxu0 %v82
  %114 = vmatpush1.msra.mxu0 %v81
  %115 = vmatprep.subr.mxu0 %v78
  %116 = vmatpush1.msra.mxu0 %v77
  %117 = vmatprep.subr.mxu0 %v74
  %118 = vmatpush1.msra.mxu0 %v73
  %119 = vmatprep.subr.mxu0 %v70
  %120 = vmatpush1.msra.mxu0 %v69
  %121 = vmatprep.subr.mxu0 %v66
  %122 = vmatpush1.msra.mxu0 %v65
  %123 = vmatprep.subr.mxu0 %v62
  %124 = vmatpush1.msra.mxu0 %v61
  %125 = vmatprep.subr.mxu0 %v58
  %126 = vmatpush1.msra.mxu0 %v57
  %127 = vmatprep.subr.mxu0 %v54
  %128 = vmatpush1.msra.mxu0 %v53
  %129 = vmatprep.subr.mxu0 %v50
  %130 = vmatpush1.msra.mxu0 %v49
  %131 = vmatprep.subr.mxu0 %v46
  %132 = vmatpush1.msra.mxu0 %v45
  %133 = vmatprep.subr.mxu0 %v42
  %134 = vmatpush1.msra.mxu0 %v41
  %135 = vmatprep.subr.mxu0 %v38
  %136 = vmatpush1.msra.mxu0 %v37
  %137 = vmatprep.subr.mxu0 %v34
  %138 = vmatpush1.msra.mxu0 %v33
  %139 = vmatprep.subr.mxu0 %v30
  %140 = vmatpush1.msra.mxu0 %v29
  %141 = vmatprep.subr.mxu0 %v26
  %142 = vmatpush1.msra.mxu0 %v25
  %143 = vmatprep.subr.mxu0 0.0
  %144 = vmatpush2.msra.mxu0 0.0
  %145 = vmatprep.subr.mxu0 0.0
  %146 = vmatpush2.msra.mxu0 0.0
  %147 = vmatprep.subr.mxu0 0.0
  %148 = vmatpush2.msra.mxu0 0.0
  %149 = vmatprep.subr.mxu0 0.0
  %150 = vmatpush2.msra.mxu0 0.0
  %151 = vmatprep.subr.mxu0 0.0
  %152 = vmatpush2.msra.mxu0 0.0
  %153 = vmatprep.subr.mxu0 0.0
  %154 = vmatpush2.msra.mxu0 0.0
  %155 = vmatprep.subr.mxu0 0.0
  %156 = vmatpush2.msra.mxu0 0.0
  %157 = vmatprep.subr.mxu0 0.0
  %158 = vmatpush2.msra.mxu0 0.0
  %159 = vmatprep.subr.mxu0 0.0
  %160 = vmatpush2.msra.mxu0 0.0
  %161 = vmatprep.subr.mxu0 0.0
  %162 = vmatpush2.msra.mxu0 0.0
  %163 = vmatprep.subr.mxu0 0.0
  %164 = vmatpush2.msra.mxu0 0.0
  %165 = vmatprep.subr.mxu0 0.0
  %166 = vmatpush2.msra.mxu0 0.0
  %167 = vmatprep.subr.mxu0 0.0
  %168 = vmatpush2.msra.mxu0 0.0
  %169 = vmatprep.subr.mxu0 0.0
  %170 = vmatpush2.msra.mxu0 0.0
  %171 = vmatprep.subr.mxu0 0.0
  %172 = vmatpush2.msra.mxu0 0.0
  %173 = vmatprep.subr.mxu0 0.0
  %174 = vmatpush2.msra.mxu0 0.0
  %175 = vmatprep.mubr.f32.mxu0 0.0
  %176 = vmatmul.mubr.f32.gmra.mxu0 %v17
  %v177 = vpop.f32.mrf.mxu0
  %v178 = vadd.f32 %v94, %v177
  %v179 = vpop.f32.mrf.mxu0
  %v180 = vadd.f32 %v98, %v179
  %181 = vmatprep.mubr.f32.mxu0 0.0
  %182 = vmatmul.mubr.f32.gmra.mxu0 %v18
  %v183 = vpop.f32.mrf.mxu0
  %v184 = vadd.f32 %v94, %v183
  %v185 = vpop.f32.mrf.mxu0
  %v186 = vadd.f32 %v98, %v185
  %187 = vmatprep.mubr.f32.mxu0 0.0
  %188 = vmatmul.mubr.f32.gmra.mxu0 %v19
  %v189 = vpop.f32.mrf.mxu0
  %v190 = vadd.f32 %v94, %v189
  %v191 = vpop.f32.mrf.mxu0
  %v192 = vadd.f32 %v98, %v191
  %193 = vmatprep.mubr.f32.mxu0 0.0
  %194 = vmatmul.mubr.f32.gmra.mxu0 %v20
  %v195 = vpop.f32.mrf.mxu0
  %v196 = vadd.f32 %v94, %v195
  %v197 = vpop.f32.mrf.mxu0
  %v198 = vadd.f32 %v98, %v197
  %199 = vmatprep.mubr.f32.mxu0 0.0
  %200 = vmatmul.mubr.f32.gmra.mxu0 %v21
  %v201 = vpop.f32.mrf.mxu0
  %v202 = vadd.f32 %v94, %v201
  %v203 = vpop.f32.mrf.mxu0
  %v204 = vadd.f32 %v98, %v203
  %205 = vmatprep.mubr.f32.mxu0 0.0
  %206 = vmatmul.mubr.f32.gmra.mxu0 %v22
  %v207 = vpop.f32.mrf.mxu0
  %v208 = vadd.f32 %v94, %v207
  %v209 = vpop.f32.mrf.mxu0
  %v210 = vadd.f32 %v98, %v209
  %211 = vmatprep.mubr.f32.mxu0 0.0
  %212 = vmatmul.mubr.f32.gmra.mxu0 %v23
  %v213 = vpop.f32.mrf.mxu0
  %v214 = vadd.f32 %v94, %v213
  %v215 = vpop.f32.mrf.mxu0
  %v216 = vadd.f32 %v98, %v215
  %217 = vmatprep.mubr.f32.mxu0 0.0
  %218 = vmatmul.mubr.f32.gmra.mxu0 %v24
  %v219 = vpop.f32.mrf.mxu0
  %v220 = vadd.f32 %v94, %v219
  %v221 = vpop.f32.mrf.mxu0
  %v222 = vadd.f32 %v98, %v221
  %223 = vdwg.mxu0
  %224 = vmatprep.subr.mxu0 %v88
  %225 = vmatpush1.msra.mxu0 %v87
  %226 = vmatprep.subr.mxu0 %v84
  %227 = vmatpush1.msra.mxu0 %v83
  %228 = vmatprep.subr.mxu0 %v80
  %229 = vmatpush1.msra.mxu0 %v79
  %230 = vmatprep.subr.mxu0 %v76
  %231 = vmatpush1.msra.mxu0 %v75
  %232 = vmatprep.subr.mxu0 %v72
  %233 = vmatpush1.msra.mxu0 %v71
  %234 = vmatprep.subr.mxu0 %v68
  %235 = vmatpush1.msra.mxu0 %v67
  %236 = vmatprep.subr.mxu0 %v64
  %237 = vmatpush1.msra.mxu0 %v63
  %238 = vmatprep.subr.mxu0 %v60
  %239 = vmatpush1.msra.mxu0 %v59
  %240 = vmatprep.subr.mxu0 %v56
  %241 = vmatpush1.msra.mxu0 %v55
  %242 = vmatprep.subr.mxu0 %v52
  %243 = vmatpush1.msra.mxu0 %v51
  %244 = vmatprep.subr.mxu0 %v48
  %245 = vmatpush1.msra.mxu0 %v47
  %246 = vmatprep.subr.mxu0 %v44
  %247 = vmatpush1.msra.mxu0 %v43
  %248 = vmatprep.subr.mxu0 %v40
  %249 = vmatpush1.msra.mxu0 %v39
  %250 = vmatprep.subr.mxu0 %v36
  %251 = vmatpush1.msra.mxu0 %v35
  %252 = vmatprep.subr.mxu0 %v32
  %253 = vmatpush1.msra.mxu0 %v31
  %254 = vmatprep.subr.mxu0 %v28
  %255 = vmatpush1.msra.mxu0 %v27
  %256 = vmatprep.subr.mxu0 0.0
  %257 = vmatpush2.msra.mxu0 0.0
  %258 = vmatprep.subr.mxu0 0.0
  %259 = vmatpush2.msra.mxu0 0.0
  %260 = vmatprep.subr.mxu0 0.0
  %261 = vmatpush2.msra.mxu0 0.0
  %262 = vmatprep.subr.mxu0 0.0
  %263 = vmatpush2.msra.mxu0 0.0
  %264 = vmatprep.subr.mxu0 0.0
  %265 = vmatpush2.msra.mxu0 0.0
  %266 = vmatprep.subr.mxu0 0.0
  %267 = vmatpush2.msra.mxu0 0.0
  %268 = vmatprep.subr.mxu0 0.0
  %269 = vmatpush2.msra.mxu0 0.0
  %270 = vmatprep.subr.mxu0 0.0
  %271 = vmatpush2.msra.mxu0 0.0
  %272 = vmatprep.subr.mxu0 0.0
  %273 = vmatpush2.msra.mxu0 0.0
  %274 = vmatprep.subr.mxu0 0.0
  %275 = vmatpush2.msra.mxu0 0.0
  %276 = vmatprep.subr.mxu0 0.0
  %277 = vmatpush2.msra.mxu0 0.0
  %278 = vmatprep.subr.mxu0 0.0
  %279 = vmatpush2.msra.mxu0 0.0
  %280 = vmatprep.subr.mxu0 0.0
  %281 = vmatpush2.msra.mxu0 0.0
  %282 = vmatprep.subr.mxu0 0.0
  %283 = vmatpush2.msra.mxu0 0.0
  %284 = vmatprep.subr.mxu0 0.0
  %285 = vmatpush2.msra.mxu0 0.0
  %286 = vmatprep.subr.mxu0 0.0
  %287 = vmatpush2.msra.mxu0 0.0
  %288 = vmatprep.mubr.f32.mxu0 0.0
  %289 = vmatmul.mubr.f32.gmra.mxu0 %v17
  %v290 = vpop.f32.mrf.mxu0
  %v291 = vadd.f32 %v102, %v290
  %v292 = vpop.f32.mrf.mxu0
  %v293 = vadd.f32 %v106, %v292
  %294 = vmatprep.mubr.f32.mxu0 0.0
  %295 = vmatmul.mubr.f32.gmra.mxu0 %v18
  %v296 = vpop.f32.mrf.mxu0
  %v297 = vadd.f32 %v102, %v296
  %v298 = vpop.f32.mrf.mxu0
  %v299 = vadd.f32 %v106, %v298
  %300 = vmatprep.mubr.f32.mxu0 0.0
  %301 = vmatmul.mubr.f32.gmra.mxu0 %v19
  %v302 = vpop.f32.mrf.mxu0
  %v303 = vadd.f32 %v102, %v302
  %v304 = vpop.f32.mrf.mxu0
  %v305 = vadd.f32 %v106, %v304
  %306 = vmatprep.mubr.f32.mxu0 0.0
  %307 = vmatmul.mubr.f32.gmra.mxu0 %v20
  %v308 = vpop.f32.mrf.mxu0
  %v309 = vadd.f32 %v102, %v308
  %v310 = vpop.f32.mrf.mxu0
  %v311 = vadd.f32 %v106, %v310
  %312 = vmatprep.mubr.f32.mxu0 0.0
  %313 = vmatmul.mubr.f32.gmra.mxu0 %v21
  %v314 = vpop.f32.mrf.mxu0
  %v315 = vadd.f32 %v102, %v314
  %v316 = vpop.f32.mrf.mxu0
  %v317 = vadd.f32 %v106, %v316
  %318 = vmatprep.mubr.f32.mxu0 0.0
  %319 = vmatmul.mubr.f32.gmra.mxu0 %v22
  %v320 = vpop.f32.mrf.mxu0
  %v321 = vadd.f32 %v102, %v320
  %v322 = vpop.f32.mrf.mxu0
  %v323 = vadd.f32 %v106, %v322
  %324 = vmatprep.mubr.f32.mxu0 0.0
  %325 = vmatmul.mubr.f32.gmra.mxu0 %v23
  %v326 = vpop.f32.mrf.mxu0
  %v327 = vadd.f32 %v102, %v326
  %v328 = vpop.f32.mrf.mxu0
  %v329 = vadd.f32 %v106, %v328
  %330 = vmatprep.mubr.f32.mxu0 0.0
  %331 = vmatmul.mubr.f32.gmra.mxu0 %v24
  %v332 = vpop.f32.mrf.mxu0
  %v333 = vadd.f32 %v102, %v332
  %v334 = vpop.f32.mrf.mxu0
  %v335 = vadd.f32 %v106, %v334
  %336 = vdwg.mxu0
  %337 = vst [vmem:[#allocation2] sm:$0xff] %v178
  %338 = vst [vmem:[#allocation2 + $0x8] sm:$0xff] %v180
  %339 = vst [vmem:[#allocation2 + $0x10] sm:$0xff] %v291
  %340 = vst [vmem:[#allocation2 + $0x18] sm:$0xff] %v293
  %341 = vst [vmem:[#allocation2 + $0x20] sm:$0xff] %v184
  %342 = vst [vmem:[#allocation2 + $0x28] sm:$0xff] %v186
  %343 = vst [vmem:[#allocation2 + $0x30] sm:$0xff] %v297
  %344 = vst [vmem:[#allocation2 + $0x38] sm:$0xff] %v299
  %345 = vst [vmem:[#allocation2 + $0x40] sm:$0xff] %v190
  %346 = vst [vmem:[#allocation2 + $0x48] sm:$0xff] %v192
  %347 = vst [vmem:[#allocation2 + $0x50] sm:$0xff] %v303
  %348 = vst [vmem:[#allocation2 + $0x58] sm:$0xff] %v305
  %349 = vst [vmem:[#allocation2 + $0x60] sm:$0xff] %v196
  %350 = vst [vmem:[#allocation2 + $0x68] sm:$0xff] %v198
  %351 = vst [vmem:[#allocation2 + $0x70] sm:$0xff] %v309
  %352 = vst [vmem:[#allocation2 + $0x78] sm:$0xff] %v311
  %353 = vst [vmem:[#allocation2 + $0x80] sm:$0xff] %v202
  %354 = vst [vmem:[#allocation2 + $0x88] sm:$0xff] %v204
  %355 = vst [vmem:[#allocation2 + $0x90] sm:$0xff] %v315
  %356 = vst [vmem:[#allocation2 + $0x98] sm:$0xff] %v317
  %357 = vst [vmem:[#allocation2 + $0xa0] sm:$0xff] %v208
  %358 = vst [vmem:[#allocation2 + $0xa8] sm:$0xff] %v210
  %359 = vst [vmem:[#allocation2 + $0xb0] sm:$0xff] %v321
  %360 = vst [vmem:[#allocation2 + $0xb8] sm:$0xff] %v323
  %361 = vst [vmem:[#allocation2 + $0xc0] sm:$0xff] %v214
  %362 = vst [vmem:[#allocation2 + $0xc8] sm:$0xff] %v216
  %363 = vst [vmem:[#allocation2 + $0xd0] sm:$0xff] %v327
  %364 = vst [vmem:[#allocation2 + $0xd8] sm:$0xff] %v329
  %365 = vst [vmem:[#allocation2 + $0xe0] sm:$0xff] %v220
  %366 = vst [vmem:[#allocation2 + $0xe8] sm:$0xff] %v222
  %367 = vst [vmem:[#allocation2 + $0xf0] sm:$0xff] %v333
  %368 = vst [vmem:[#allocation2 + $0xf8] sm:$0xff] %v335
  %v369 = vld [vmem:[#allocation2] sm:$0xff]
  %v370 = vld [vmem:[#allocation2 + $0x8] sm:$0xff]
  %v371 = vld [vmem:[#allocation2 + $0x10] sm:$0xff]
  %v372 = vld [vmem:[#allocation2 + $0x18] sm:$0xff]
  %v373 = vld [vmem:[%s2] sm:$0xff]
  %v374 = vld [vmem:[%s2 + $0x8] sm:$0xff]
  %v375 = vld [vmem:[%s2 + $0x10] sm:$0xff]
  %v376 = vld [vmem:[%s2 + $0x18] sm:$0xff]
  %v377 = vld [vmem:[%s2 + $0x20] sm:$0xff]
  %v378 = vld [vmem:[%s2 + $0x28] sm:$0xff]
  %v379 = vld [vmem:[%s2 + $0x30] sm:$0xff]
  %v380 = vld [vmem:[%s2 + $0x38] sm:$0xff]
  %v381 = vld [vmem:[%s2 + $0x40] sm:$0xff]
  %v382 = vld [vmem:[%s2 + $0x48] sm:$0xff]
  %v383 = vld [vmem:[%s2 + $0x50] sm:$0xff]
  %v384 = vld [vmem:[%s2 + $0x58] sm:$0xff]
  %v385 = vld [vmem:[%s2 + $0x60] sm:$0xff]
  %v386 = vld [vmem:[%s2 + $0x68] sm:$0xff]
  %v387 = vld [vmem:[%s2 + $0x70] sm:$0xff]
  %v388 = vld [vmem:[%s2 + $0x78] sm:$0xff]
  %v389 = vld [vmem:[%s2 + $0x80] sm:$0xff]
  %v390 = vld [vmem:[%s2 + $0x88] sm:$0xff]
  %v391 = vld [vmem:[%s2 + $0x90] sm:$0xff]
  %v392 = vld [vmem:[%s2 + $0x98] sm:$0xff]
  %v393 = vld [vmem:[%s2 + $0xa0] sm:$0xff]
  %v394 = vld [vmem:[%s2 + $0xa8] sm:$0xff]
  %v395 = vld [vmem:[%s2 + $0xb0] sm:$0xff]
  %v396 = vld [vmem:[%s2 + $0xb8] sm:$0xff]
  %v397 = vld [vmem:[%s2 + $0xc0] sm:$0xff]
  %v398 = vld [vmem:[%s2 + $0xc8] sm:$0xff]
  %v399 = vld [vmem:[%s2 + $0xd0] sm:$0xff]
  %v400 = vld [vmem:[%s2 + $0xd8] sm:$0xff]
  %v401 = vld [vmem:[%s2 + $0xe0] sm:$0xff]
  %v402 = vld [vmem:[%s2 + $0xe8] sm:$0xff]
  %v403 = vld [vmem:[%s2 + $0xf0] sm:$0xff]
  %v404 = vld [vmem:[%s2 + $0xf8] sm:$0xff]
  %v405 = vld [vmem:[%s2 + $0x100] sm:$0xff]
  %v406 = vld [vmem:[%s2 + $0x108] sm:$0xff]
  %v407 = vld [vmem:[%s2 + $0x110] sm:$0xff]
  %v408 = vld [vmem:[%s2 + $0x118] sm:$0xff]
  %v409 = vld [vmem:[%s2 + $0x120] sm:$0xff]
  %v410 = vld [vmem:[%s2 + $0x128] sm:$0xff]
  %v411 = vld [vmem:[%s2 + $0x130] sm:$0xff]
  %v412 = vld [vmem:[%s2 + $0x138] sm:$0xff]
  %v413 = vld [vmem:[%s2 + $0x140] sm:$0xff]
  %v414 = vld [vmem:[%s2 + $0x148] sm:$0xff]
  %v415 = vld [vmem:[%s2 + $0x150] sm:$0xff]
  %v416 = vld [vmem:[%s2 + $0x158] sm:$0xff]
  %v417 = vld [vmem:[%s2 + $0x160] sm:$0xff]
  %v418 = vld [vmem:[%s2 + $0x168] sm:$0xff]
  %v419 = vld [vmem:[%s2 + $0x170] sm:$0xff]
  %v420 = vld [vmem:[%s2 + $0x178] sm:$0xff]
  %v421 = vld [vmem:[%s2 + $0x180] sm:$0xff]
  %v422 = vld [vmem:[%s2 + $0x188] sm:$0xff]
  %v423 = vld [vmem:[%s2 + $0x190] sm:$0xff]
  %v424 = vld [vmem:[%s2 + $0x198] sm:$0xff]
  %v425 = vld [vmem:[%s2 + $0x1a0] sm:$0xff]
  %v426 = vld [vmem:[%s2 + $0x1a8] sm:$0xff]
  %v427 = vld [vmem:[%s2 + $0x1b0] sm:$0xff]
  %v428 = vld [vmem:[%s2 + $0x1b8] sm:$0xff]
  %v429 = vld [vmem:[%s2 + $0x1c0] sm:$0xff]
  %v430 = vld [vmem:[%s2 + $0x1c8] sm:$0xff]
  %v431 = vld [vmem:[%s2 + $0x1d0] sm:$0xff]
  %v432 = vld [vmem:[%s2 + $0x1d8] sm:$0xff]
  %v433 = vld [vmem:[%s2 + $0x1e0] sm:$0xff]
  %v434 = vld [vmem:[%s2 + $0x1e8] sm:$0xff]
  %v435 = vld [vmem:[%s2 + $0x1f0] sm:$0xff]
  %v436 = vld [vmem:[%s2 + $0x1f8] sm:$0xff]
  %437 = vmatprep.subr.mxu0 %v434
  %438 = vmatpush1.msra.mxu0 %v433
  %439 = vmatprep.subr.mxu0 %v430
  %440 = vmatpush1.msra.mxu0 %v429
  %441 = vmatprep.subr.mxu0 %v426
  %442 = vmatpush1.msra.mxu0 %v425
  %443 = vmatprep.subr.mxu0 %v422
  %444 = vmatpush1.msra.mxu0 %v421
  %445 = vmatprep.subr.mxu0 %v418
  %446 = vmatpush1.msra.mxu0 %v417
  %447 = vmatprep.subr.mxu0 %v414
  %448 = vmatpush1.msra.mxu0 %v413
  %449 = vmatprep.subr.mxu0 %v410
  %450 = vmatpush1.msra.mxu0 %v409
  %451 = vmatprep.subr.mxu0 %v406
  %452 = vmatpush1.msra.mxu0 %v405
  %453 = vmatprep.subr.mxu0 %v402
  %454 = vmatpush1.msra.mxu0 %v401
  %455 = vmatprep.subr.mxu0 %v398
  %456 = vmatpush1.msra.mxu0 %v397
  %457 = vmatprep.subr.mxu0 %v394
  %458 = vmatpush1.msra.mxu0 %v393
  %459 = vmatprep.subr.mxu0 %v390
  %460 = vmatpush1.msra.mxu0 %v389
  %461 = vmatprep.subr.mxu0 %v386
  %462 = vmatpush1.msra.mxu0 %v385
  %463 = vmatprep.subr.mxu0 %v382
  %464 = vmatpush1.msra.mxu0 %v381
  %465 = vmatprep.subr.mxu0 %v378
  %466 = vmatpush1.msra.mxu0 %v377
  %467 = vmatprep.subr.mxu0 %v374
  %468 = vmatpush1.msra.mxu0 %v373
  %469 = vmatprep.subr.mxu0 0.0
  %470 = vmatpush2.msra.mxu0 0.0
  %471 = vmatprep.subr.mxu0 0.0
  %472 = vmatpush2.msra.mxu0 0.0
  %473 = vmatprep.subr.mxu0 0.0
  %474 = vmatpush2.msra.mxu0 0.0
  %475 = vmatprep.subr.mxu0 0.0
  %476 = vmatpush2.msra.mxu0 0.0
  %477 = vmatprep.subr.mxu0 0.0
  %478 = vmatpush2.msra.mxu0 0.0
  %479 = vmatprep.subr.mxu0 0.0
  %480 = vmatpush2.msra.mxu0 0.0
  %481 = vmatprep.subr.mxu0 0.0
  %482 = vmatpush2.msra.mxu0 0.0
  %483 = vmatprep.subr.mxu0 0.0
  %484 = vmatpush2.msra.mxu0 0.0
  %485 = vmatprep.subr.mxu0 0.0
  %486 = vmatpush2.msra.mxu0 0.0
  %487 = vmatprep.subr.mxu0 0.0
  %488 = vmatpush2.msra.mxu0 0.0
  %489 = vmatprep.subr.mxu0 0.0
  %490 = vmatpush2.msra.mxu0 0.0
  %491 = vmatprep.subr.mxu0 0.0
  %492 = vmatpush2.msra.mxu0 0.0
  %493 = vmatprep.subr.mxu0 0.0
  %494 = vmatpush2.msra.mxu0 0.0
  %495 = vmatprep.subr.mxu0 0.0
  %496 = vmatpush2.msra.mxu0 0.0
  %497 = vmatprep.subr.mxu0 0.0
  %498 = vmatpush2.msra.mxu0 0.0
  %499 = vmatprep.subr.mxu0 0.0
  %500 = vmatpush2.msra.mxu0 0.0
  %501 = vmatprep.mubr.f32.mxu0 0.0
  %502 = vmatmul.mubr.f32.gmra.mxu0 0.0
  %v503 = vpop.f32.mrf.mxu0
  %v504 = vadd.f32 0.0, %v503
  %v505 = vpop.f32.mrf.mxu0
  %v506 = vadd.f32 0.0, %v505
  %507 = vdwg.mxu0
  %508 = vmatprep.subr.mxu0 %v436
  %509 = vmatpush1.msra.mxu0 %v435
  %510 = vmatprep.subr.mxu0 %v432
  %511 = vmatpush1.msra.mxu0 %v431
  %512 = vmatprep.subr.mxu0 %v428
  %513 = vmatpush1.msra.mxu0 %v427
  %514 = vmatprep.subr.mxu0 %v424
  %515 = vmatpush1.msra.mxu0 %v423
  %516 = vmatprep.subr.mxu0 %v420
  %517 = vmatpush1.msra.mxu0 %v419
  %518 = vmatprep.subr.mxu0 %v416
  %519 = vmatpush1.msra.mxu0 %v415
  %520 = vmatprep.subr.mxu0 %v412
  %521 = vmatpush1.msra.mxu0 %v411
  %522 = vmatprep.subr.mxu0 %v408
  %523 = vmatpush1.msra.mxu0 %v407
  %524 = vmatprep.subr.mxu0 %v404
  %525 = vmatpush1.msra.mxu0 %v403
  %526 = vmatprep.subr.mxu0 %v400
  %527 = vmatpush1.msra.mxu0 %v399
  %528 = vmatprep.subr.mxu0 %v396
  %529 = vmatpush1.msra.mxu0 %v395
  %530 = vmatprep.subr.mxu0 %v392
  %531 = vmatpush1.msra.mxu0 %v391
  %532 = vmatprep.subr.mxu0 %v388
  %533 = vmatpush1.msra.mxu0 %v387
  %534 = vmatprep.subr.mxu0 %v384
  %535 = vmatpush1.msra.mxu0 %v383
  %536 = vmatprep.subr.mxu0 %v380
  %537 = vmatpush1.msra.mxu0 %v379
  %538 = vmatprep.subr.mxu0 %v376
  %539 = vmatpush1.msra.mxu0 %v375
  %540 = vmatprep.subr.mxu0 0.0
  %541 = vmatpush2.msra.mxu0 0.0
  %542 = vmatprep.subr.mxu0 0.0
  %543 = vmatpush2.msra.mxu0 0.0
  %544 = vmatprep.subr.mxu0 0.0
  %545 = vmatpush2.msra.mxu0 0.0
  %546 = vmatprep.subr.mxu0 0.0
  %547 = vmatpush2.msra.mxu0 0.0
  %548 = vmatprep.subr.mxu0 0.0
  %549 = vmatpush2.msra.mxu0 0.0
  %550 = vmatprep.subr.mxu0 0.0
  %551 = vmatpush2.msra.mxu0 0.0
  %552 = vmatprep.subr.mxu0 0.0
  %553 = vmatpush2.msra.mxu0 0.0
  %554 = vmatprep.subr.mxu0 0.0
  %555 = vmatpush2.msra.mxu0 0.0
  %556 = vmatprep.subr.mxu0 0.0
  %557 = vmatpush2.msra.mxu0 0.0
  %558 = vmatprep.subr.mxu0 0.0
  %559 = vmatpush2.msra.mxu0 0.0
  %560 = vmatprep.subr.mxu0 0.0
  %561 = vmatpush2.msra.mxu0 0.0
  %562 = vmatprep.subr.mxu0 0.0
  %563 = vmatpush2.msra.mxu0 0.0
  %564 = vmatprep.subr.mxu0 0.0
  %565 = vmatpush2.msra.mxu0 0.0
  %566 = vmatprep.subr.mxu0 0.0
  %567 = vmatpush2.msra.mxu0 0.0
  %568 = vmatprep.subr.mxu0 0.0
  %569 = vmatpush2.msra.mxu0 0.0
  %570 = vmatprep.subr.mxu0 0.0
  %571 = vmatpush2.msra.mxu0 0.0
  %572 = vmatprep.mubr.f32.mxu0 0.0
  %573 = vmatmul.mubr.f32.gmra.mxu0 0.0
  %v574 = vpop.f32.mrf.mxu0
  %v575 = vadd.f32 0.0, %v574
  %v576 = vpop.f32.mrf.mxu0
  %v577 = vadd.f32 0.0, %v576
  %578 = vdwg.mxu0
  %v579 = vadd.f32 %v369, %v504
  %v580 = vadd.f32 %v370, %v506
  %v581 = vadd.f32 %v371, %v575
  %v582 = vadd.f32 %v372, %v577
  %v583 = vxor.u32 %v579, 2147483648
  %v584 = vxor.u32 %v580, 2147483648
  %v585 = vxor.u32 %v581, 2147483648
  %v586 = vmul.f32 %v583, 1.442695
  %v587 = vpow.pop %v586
  %v588 = vmul.f32 %v584, 1.442695
  %v589 = vpow.pop %v588
  %v590 = vmul.f32 %v585, 1.442695
  %v591 = vpow.pop %v590
  %v592 = vadd.f32 %v587, 1.0
  %v593 = vadd.f32 %v589, 1.0
  %v594 = vadd.f32 %v591, 1.0
  %v595 = vrcp.pop %v592
  %v596 = vmul.f32 1.0, %v595
  %v597 = vrcp.pop %v593
  %v598 = vmul.f32 1.0, %v597
  %v599 = vrcp.pop %v594
  %v600 = vmul.f32 1.0, %v599
  %v601 = vtanh.pop %v582
  %v602 = vmul.f32 %v598, 0.0
  %v603 = vmul.f32 %v596, %v601
  %v604 = vadd.f32 %v602, %v603
  %v605 = vtanh.pop %v604
  %v606 = vmul.f32 %v600, %v605
  %s607 = scalar_lea.vmem [#allocation2], 32
  %v608 = vld [vmem:[%s607] sm:$0xff]
  %v609 = vld [vmem:[%s607 + $0x8] sm:$0xff]
  %v610 = vld [vmem:[%s607 + $0x10] sm:$0xff]
  %v611 = vld [vmem:[%s607 + $0x18] sm:$0xff]
  %612 = vmatprep.subr.mxu0 %v434
  %613 = vmatpush1.msra.mxu0 %v433
  %614 = vmatprep.subr.mxu0 %v430
  %615 = vmatpush1.msra.mxu0 %v429
  %616 = vmatprep.subr.mxu0 %v426
  %617 = vmatpush1.msra.mxu0 %v425
  %618 = vmatprep.subr.mxu0 %v422
  %619 = vmatpush1.msra.mxu0 %v421
  %620 = vmatprep.subr.mxu0 %v418
  %621 = vmatpush1.msra.mxu0 %v417
  %622 = vmatprep.subr.mxu0 %v414
  %623 = vmatpush1.msra.mxu0 %v413
  %624 = vmatprep.subr.mxu0 %v410
  %625 = vmatpush1.msra.mxu0 %v409
  %626 = vmatprep.subr.mxu0 %v406
  %627 = vmatpush1.msra.mxu0 %v405
  %628 = vmatprep.subr.mxu0 %v402
  %629 = vmatpush1.msra.mxu0 %v401
  %630 = vmatprep.subr.mxu0 %v398
  %631 = vmatpush1.msra.mxu0 %v397
  %632 = vmatprep.subr.mxu0 %v394
  %633 = vmatpush1.msra.mxu0 %v393
  %634 = vmatprep.subr.mxu0 %v390
  %635 = vmatpush1.msra.mxu0 %v389
  %636 = vmatprep.subr.mxu0 %v386
  %637 = vmatpush1.msra.mxu0 %v385
  %638 = vmatprep.subr.mxu0 %v382
  %639 = vmatpush1.msra.mxu0 %v381
  %640 = vmatprep.subr.mxu0 %v378
  %641 = vmatpush1.msra.mxu0 %v377
  %642 = vmatprep.subr.mxu0 %v374
  %643 = vmatpush1.msra.mxu0 %v373
  %644 = vmatprep.subr.mxu0 0.0
  %645 = vmatpush2.msra.mxu0 0.0
  %646 = vmatprep.subr.mxu0 0.0
  %647 = vmatpush2.msra.mxu0 0.0
  %648 = vmatprep.subr.mxu0 0.0
  %649 = vmatpush2.msra.mxu0 0.0
  %650 = vmatprep.subr.mxu0 0.0
  %651 = vmatpush2.msra.mxu0 0.0
  %652 = vmatprep.subr.mxu0 0.0
  %653 = vmatpush2.msra.mxu0 0.0
  %654 = vmatprep.subr.mxu0 0.0
  %655 = vmatpush2.msra.mxu0 0.0
  %656 = vmatprep.subr.mxu0 0.0
  %657 = vmatpush2.msra.mxu0 0.0
  %658 = vmatprep.subr.mxu0 0.0
  %659 = vmatpush2.msra.mxu0 0.0
  %660 = vmatprep.subr.mxu0 0.0
  %661 = vmatpush2.msra.mxu0 0.0
  %662 = vmatprep.subr.mxu0 0.0
  %663 = vmatpush2.msra.mxu0 0.0
  %664 = vmatprep.subr.mxu0 0.0
  %665 = vmatpush2.msra.mxu0 0.0
  %666 = vmatprep.subr.mxu0 0.0
  %667 = vmatpush2.msra.mxu0 0.0
  %668 = vmatprep.subr.mxu0 0.0
  %669 = vmatpush2.msra.mxu0 0.0
  %670 = vmatprep.subr.mxu0 0.0
  %671 = vmatpush2.msra.mxu0 0.0
  %672 = vmatprep.subr.mxu0 0.0
  %673 = vmatpush2.msra.mxu0 0.0
  %674 = vmatprep.subr.mxu0 0.0
  %675 = vmatpush2.msra.mxu0 0.0
  %676 = vmatprep.mubr.f32.mxu0 0.0
  %677 = vmatmul.mubr.f32.gmra.mxu0 %v606
  %v678 = vpop.f32.mrf.mxu0
  %v679 = vadd.f32 0.0, %v678
  %v680 = vpop.f32.mrf.mxu0
  %v681 = vadd.f32 0.0, %v680
  %682 = vdwg.mxu0
  %683 = vmatprep.subr.mxu0 %v436
  %684 = vmatpush1.msra.mxu0 %v435
  %685 = vmatprep.subr.mxu0 %v432
  %686 = vmatpush1.msra.mxu0 %v431
  %687 = vmatprep.subr.mxu0 %v428
  %688 = vmatpush1.msra.mxu0 %v427
  %689 = vmatprep.subr.mxu0 %v424
  %690 = vmatpush1.msra.mxu0 %v423
  %691 = vmatprep.subr.mxu0 %v420
  %692 = vmatpush1.msra.mxu0 %v419
  %693 = vmatprep.subr.mxu0 %v416
  %694 = vmatpush1.msra.mxu0 %v415
  %695 = vmatprep.subr.mxu0 %v412
  %696 = vmatpush1.msra.mxu0 %v411
  %697 = vmatprep.subr.mxu0 %v408
  %698 = vmatpush1.msra.mxu0 %v407
  %699 = vmatprep.subr.mxu0 %v404
  %700 = vmatpush1.msra.mxu0 %v403
  %701 = vmatprep.subr.mxu0 %v400
  %702 = vmatpush1.msra.mxu0 %v399
  %703 = vmatprep.subr.mxu0 %v396
  %704 = vmatpush1.msra.mxu0 %v395
  %705 = vmatprep.subr.mxu0 %v392
  %706 = vmatpush1.msra.mxu0 %v391
  %707 = vmatprep.subr.mxu0 %v388
  %708 = vmatpush1.msra.mxu0 %v387
  %709 = vmatprep.subr.mxu0 %v384
  %710 = vmatpush1.msra.mxu0 %v383
  %711 = vmatprep.subr.mxu0 %v380
  %712 = vmatpush1.msra.mxu0 %v379
  %713 = vmatprep.subr.mxu0 %v376
  %714 = vmatpush1.msra.mxu0 %v375
  %715 = vmatprep.subr.mxu0 0.0
  %716 = vmatpush2.msra.mxu0 0.0
  %717 = vmatprep.subr.mxu0 0.0
  %718 = vmatpush2.msra.mxu0 0.0
  %719 = vmatprep.subr.mxu0 0.0
  %720 = vmatpush2.msra.mxu0 0.0
  %721 = vmatprep.subr.mxu0 0.0
  %722 = vmatpush2.msra.mxu0 0.0
  %723 = vmatprep.subr.mxu0 0.0
  %724 = vmatpush2.msra.mxu0 0.0
  %725 = vmatprep.subr.mxu0 0.0
  %726 = vmatpush2.msra.mxu0 0.0
  %727 = vmatprep.subr.mxu0 0.0
  %728 = vmatpush2.msra.mxu0 0.0
  %729 = vmatprep.subr.mxu0 0.0
  %730 = vmatpush2.msra.mxu0 0.0
  %731 = vmatprep.subr.mxu0 0.0
  %732 = vmatpush2.msra.mxu0 0.0
  %733 = vmatprep.subr.mxu0 0.0
  %734 = vmatpush2.msra.mxu0 0.0
  %735 = vmatprep.subr.mxu0 0.0
  %736 = vmatpush2.msra.mxu0 0.0
  %737 = vmatprep.subr.mxu0 0.0
  %738 = vmatpush2.msra.mxu0 0.0
  %739 = vmatprep.subr.mxu0 0.0
  %740 = vmatpush2.msra.mxu0 0.0
  %741 = vmatprep.subr.mxu0 0.0
  %742 = vmatpush2.msra.mxu0 0.0
  %743 = vmatprep.subr.mxu0 0.0
  %744 = vmatpush2.msra.mxu0 0.0
  %745 = vmatprep.subr.mxu0 0.0
  %746 = vmatpush2.msra.mxu0 0.0
  %747 = vmatprep.mubr.f32.mxu0 0.0
  %748 = vmatmul.mubr.f32.gmra.mxu0 %v606
  %v749 = vpop.f32.mrf.mxu0
  %v750 = vadd.f32 0.0, %v749
  %v751 = vpop.f32.mrf.mxu0
  %v752 = vadd.f32 0.0, %v751
  %753 = vdwg.mxu0
  %v754 = vadd.f32 %v608, %v679
  %v755 = vadd.f32 %v609, %v681
  %v756 = vadd.f32 %v610, %v750
  %v757 = vadd.f32 %v611, %v752
  %v758 = vxor.u32 %v754, 2147483648
  %v759 = vxor.u32 %v755, 2147483648
  %v760 = vxor.u32 %v756, 2147483648
  %v761 = vmul.f32 %v758, 1.442695
  %v762 = vpow.pop %v761
  %v763 = vmul.f32 %v759, 1.442695
  %v764 = vpow.pop %v763
  %v765 = vmul.f32 %v760, 1.442695
  %v766 = vpow.pop %v765
  %v767 = vadd.f32 %v762, 1.0
  %v768 = vadd.f32 %v764, 1.0
  %v769 = vadd.f32 %v766, 1.0
  %v770 = vrcp.pop %v767
  %v771 = vmul.f32 1.0, %v770
  %v772 = vrcp.pop %v768
  %v773 = vmul.f32 1.0, %v772
  %v774 = vrcp.pop %v769
  %v775 = vmul.f32 1.0, %v774
  %v776 = vtanh.pop %v757
  %v777 = vmul.f32 %v773, %v604
  %v778 = vmul.f32 %v771, %v776
  %v779 = vadd.f32 %v777, %v778
  %v780 = vtanh.pop %v779
  %v781 = vmul.f32 %v775, %v780
  %s782 = scalar_lea.vmem [#allocation2], 64
  %v783 = vld [vmem:[%s782] sm:$0xff]
  %v784 = vld [vmem:[%s782 + $0x8] sm:$0xff]
  %v785 = vld [vmem:[%s782 + $0x10] sm:$0xff]
  %v786 = vld [vmem:[%s782 + $0x18] sm:$0xff]
  %787 = vmatprep.subr.mxu0 %v434
  %788 = vmatpush1.msra.mxu0 %v433
  %789 = vmatprep.subr.mxu0 %v430
  %790 = vmatpush1.msra.mxu0 %v429
  %791 = vmatprep.subr.mxu0 %v426
  %792 = vmatpush1.msra.mxu0 %v425
  %793 = vmatprep.subr.mxu0 %v422
  %794 = vmatpush1.msra.mxu0 %v421
  %795 = vmatprep.subr.mxu0 %v418
  %796 = vmatpush1.msra.mxu0 %v417
  %797 = vmatprep.subr.mxu0 %v414
  %798 = vmatpush1.msra.mxu0 %v413
  %799 = vmatprep.subr.mxu0 %v410
  %800 = vmatpush1.msra.mxu0 %v409
  %801 = vmatprep.subr.mxu0 %v406
  %802 = vmatpush1.msra.mxu0 %v405
  %803 = vmatprep.subr.mxu0 %v402
  %804 = vmatpush1.msra.mxu0 %v401
  %805 = vmatprep.subr.mxu0 %v398
  %806 = vmatpush1.msra.mxu0 %v397
  %807 = vmatprep.subr.mxu0 %v394
  %808 = vmatpush1.msra.mxu0 %v393
  %809 = vmatprep.subr.mxu0 %v390
  %810 = vmatpush1.msra.mxu0 %v389
  %811 = vmatprep.subr.mxu0 %v386
  %812 = vmatpush1.msra.mxu0 %v385
  %813 = vmatprep.subr.mxu0 %v382
  %814 = vmatpush1.msra.mxu0 %v381
  %815 = vmatprep.subr.mxu0 %v378
  %816 = vmatpush1.msra.mxu0 %v377
  %817 = vmatprep.subr.mxu0 %v374
  %818 = vmatpush1.msra.mxu0 %v373
  %819 = vmatprep.subr.mxu0 0.0
  %820 = vmatpush2.msra.mxu0 0.0
  %821 = vmatprep.subr.mxu0 0.0
  %822 = vmatpush2.msra.mxu0 0.0
  %823 = vmatprep.subr.mxu0 0.0
  %824 = vmatpush2.msra.mxu0 0.0
  %825 = vmatprep.subr.mxu0 0.0
  %826 = vmatpush2.msra.mxu0 0.0
  %827 = vmatprep.subr.mxu0 0.0
  %828 = vmatpush2.msra.mxu0 0.0
  %829 = vmatprep.subr.mxu0 0.0
  %830 = vmatpush2.msra.mxu0 0.0
  %831 = vmatprep.subr.mxu0 0.0
  %832 = vmatpush2.msra.mxu0 0.0
  %833 = vmatprep.subr.mxu0 0.0
  %834 = vmatpush2.msra.mxu0 0.0
  %835 = vmatprep.subr.mxu0 0.0
  %836 = vmatpush2.msra.mxu0 0.0
  %837 = vmatprep.subr.mxu0 0.0
  %838 = vmatpush2.msra.mxu0 0.0
  %839 = vmatprep.subr.mxu0 0.0
  %840 = vmatpush2.msra.mxu0 0.0
  %841 = vmatprep.subr.mxu0 0.0
  %842 = vmatpush2.msra.mxu0 0.0
  %843 = vmatprep.subr.mxu0 0.0
  %844 = vmatpush2.msra.mxu0 0.0
  %845 = vmatprep.subr.mxu0 0.0
  %846 = vmatpush2.msra.mxu0 0.0
  %847 = vmatprep.subr.mxu0 0.0
  %848 = vmatpush2.msra.mxu0 0.0
  %849 = vmatprep.subr.mxu0 0.0
  %850 = vmatpush2.msra.mxu0 0.0
  %851 = vmatprep.mubr.f32.mxu0 0.0
  %852 = vmatmul.mubr.f32.gmra.mxu0 %v781
  %v853 = vpop.f32.mrf.mxu0
  %v854 = vadd.f32 0.0, %v853
  %v855 = vpop.f32.mrf.mxu0
  %v856 = vadd.f32 0.0, %v855
  %857 = vdwg.mxu0
  %858 = vmatprep.subr.mxu0 %v436
  %859 = vmatpush1.msra.mxu0 %v435
  %860 = vmatprep.subr.mxu0 %v432
  %861 = vmatpush1.msra.mxu0 %v431
  %862 = vmatprep.subr.mxu0 %v428
  %863 = vmatpush1.msra.mxu0 %v427
  %864 = vmatprep.subr.mxu0 %v424
  %865 = vmatpush1.msra.mxu0 %v423
  %866 = vmatprep.subr.mxu0 %v420
  %867 = vmatpush1.msra.mxu0 %v419
  %868 = vmatprep.subr.mxu0 %v416
  %869 = vmatpush1.msra.mxu0 %v415
  %870 = vmatprep.subr.mxu0 %v412
  %871 = vmatpush1.msra.mxu0 %v411
  %872 = vmatprep.subr.mxu0 %v408
  %873 = vmatpush1.msra.mxu0 %v407
  %874 = vmatprep.subr.mxu0 %v404
  %875 = vmatpush1.msra.mxu0 %v403
  %876 = vmatprep.subr.mxu0 %v400
  %877 = vmatpush1.msra.mxu0 %v399
  %878 = vmatprep.subr.mxu0 %v396
  %879 = vmatpush1.msra.mxu0 %v395
  %880 = vmatprep.subr.mxu0 %v392
  %881 = vmatpush1.msra.mxu0 %v391
  %882 = vmatprep.subr.mxu0 %v388
  %883 = vmatpush1.msra.mxu0 %v387
  %884 = vmatprep.subr.mxu0 %v384
  %885 = vmatpush1.msra.mxu0 %v383
  %886 = vmatprep.subr.mxu0 %v380
  %887 = vmatpush1.msra.mxu0 %v379
  %888 = vmatprep.subr.mxu0 %v376
  %889 = vmatpush1.msra.mxu0 %v375
  %890 = vmatprep.subr.mxu0 0.0
  %891 = vmatpush2.msra.mxu0 0.0
  %892 = vmatprep.subr.mxu0 0.0
  %893 = vmatpush2.msra.mxu0 0.0
  %894 = vmatprep.subr.mxu0 0.0
  %895 = vmatpush2.msra.mxu0 0.0
  %896 = vmatprep.subr.mxu0 0.0
  %897 = vmatpush2.msra.mxu0 0.0
  %898 = vmatprep.subr.mxu0 0.0
  %899 = vmatpush2.msra.mxu0 0.0
  %900 = vmatprep.subr.mxu0 0.0
  %901 = vmatpush2.msra.mxu0 0.0
  %902 = vmatprep.subr.mxu0 0.0
  %903 = vmatpush2.msra.mxu0 0.0
  %904 = vmatprep.subr.mxu0 0.0
  %905 = vmatpush2.msra.mxu0 0.0
  %906 = vmatprep.subr.mxu0 0.0
  %907 = vmatpush2.msra.mxu0 0.0
  %908 = vmatprep.subr.mxu0 0.0
  %909 = vmatpush2.msra.mxu0 0.0
  %910 = vmatprep.subr.mxu0 0.0
  %911 = vmatpush2.msra.mxu0 0.0
  %912 = vmatprep.subr.mxu0 0.0
  %913 = vmatpush2.msra.mxu0 0.0
  %914 = vmatprep.subr.mxu0 0.0
  %915 = vmatpush2.msra.mxu0 0.0
  %916 = vmatprep.subr.mxu0 0.0
  %917 = vmatpush2.msra.mxu0 0.0
  %918 = vmatprep.subr.mxu0 0.0
  %919 = vmatpush2.msra.mxu0 0.0
  %920 = vmatprep.subr.mxu0 0.0
  %921 = vmatpush2.msra.mxu0 0.0
  %922 = vmatprep.mubr.f32.mxu0 0.0
  %923 = vmatmul.mubr.f32.gmra.mxu0 %v781
  %v924 = vpop.f32.mrf.mxu0
  %v925 = vadd.f32 0.0, %v924
  %v926 = vpop.f32.mrf.mxu0
  %v927 = vadd.f32 0.0, %v926
  %928 = vdwg.mxu0
  %v929 = vadd.f32 %v783, %v854
  %v930 = vadd.f32 %v784, %v856
  %v931 = vadd.f32 %v785, %v925
  %v932 = vadd.f32 %v786, %v927
  %v933 = vxor.u32 %v929, 2147483648
  %v934 = vxor.u32 %v930, 2147483648
  %v935 = vxor.u32 %v931, 2147483648
  %v936 = vmul.f32 %v933, 1.442695
  %v937 = vpow.pop %v936
  %v938 = vmul.f32 %v934, 1.442695
  %v939 = vpow.pop %v938
  %v940 = vmul.f32 %v935, 1.442695
  %v941 = vpow.pop %v940
  %v942 = vadd.f32 %v937, 1.0
  %v943 = vadd.f32 %v939, 1.0
  %v944 = vadd.f32 %v941, 1.0
  %v945 = vrcp.pop %v942
  %v946 = vmul.f32 1.0, %v945
  %v947 = vrcp.pop %v943
  %v948 = vmul.f32 1.0, %v947
  %v949 = vrcp.pop %v944
  %v950 = vmul.f32 1.0, %v949
  %v951 = vtanh.pop %v932
  %v952 = vmul.f32 %v948, %v779
  %v953 = vmul.f32 %v946, %v951
  %v954 = vadd.f32 %v952, %v953
  %v955 = vtanh.pop %v954
  %v956 = vmul.f32 %v950, %v955
  %s957 = scalar_lea.vmem [#allocation2], 96
  %v958 = vld [vmem:[%s957] sm:$0xff]
  %v959 = vld [vmem:[%s957 + $0x8] sm:$0xff]
  %v960 = vld [vmem:[%s957 + $0x10] sm:$0xff]
  %v961 = vld [vmem:[%s957 + $0x18] sm:$0xff]
  %962 = vmatprep.subr.mxu0 %v434
  %963 = vmatpush1.msra.mxu0 %v433
  %964 = vmatprep.subr.mxu0 %v430
  %965 = vmatpush1.msra.mxu0 %v429
  %966 = vmatprep.subr.mxu0 %v426
  %967 = vmatpush1.msra.mxu0 %v425
  %968 = vmatprep.subr.mxu0 %v422
  %969 = vmatpush1.msra.mxu0 %v421
  %970 = vmatprep.subr.mxu0 %v418
  %971 = vmatpush1.msra.mxu0 %v417
  %972 = vmatprep.subr.mxu0 %v414
  %973 = vmatpush1.msra.mxu0 %v413
  %974 = vmatprep.subr.mxu0 %v410
  %975 = vmatpush1.msra.mxu0 %v409
  %976 = vmatprep.subr.mxu0 %v406
  %977 = vmatpush1.msra.mxu0 %v405
  %978 = vmatprep.subr.mxu0 %v402
  %979 = vmatpush1.msra.mxu0 %v401
  %980 = vmatprep.subr.mxu0 %v398
  %981 = vmatpush1.msra.mxu0 %v397
  %982 = vmatprep.subr.mxu0 %v394
  %983 = vmatpush1.msra.mxu0 %v393
  %984 = vmatprep.subr.mxu0 %v390
  %985 = vmatpush1.msra.mxu0 %v389
  %986 = vmatprep.subr.mxu0 %v386
  %987 = vmatpush1.msra.mxu0 %v385
  %988 = vmatprep.subr.mxu0 %v382
  %989 = vmatpush1.msra.mxu0 %v381
  %990 = vmatprep.subr.mxu0 %v378
  %991 = vmatpush1.msra.mxu0 %v377
  %992 = vmatprep.subr.mxu0 %v374
  %993 = vmatpush1.msra.mxu0 %v373
  %994 = vmatprep.subr.mxu0 0.0
  %995 = vmatpush2.msra.mxu0 0.0
  %996 = vmatprep.subr.mxu0 0.0
  %997 = vmatpush2.msra.mxu0 0.0
  %998 = vmatprep.subr.mxu0 0.0
  %999 = vmatpush2.msra.mxu0 0.0
  %1000 = vmatprep.subr.mxu0 0.0
  %1001 = vmatpush2.msra.mxu0 0.0
  %1002 = vmatprep.subr.mxu0 0.0
  %1003 = vmatpush2.msra.mxu0 0.0
  %1004 = vmatprep.subr.mxu0 0.0
  %1005 = vmatpush2.msra.mxu0 0.0
  %1006 = vmatprep.subr.mxu0 0.0
  %1007 = vmatpush2.msra.mxu0 0.0
  %1008 = vmatprep.subr.mxu0 0.0
  %1009 = vmatpush2.msra.mxu0 0.0
  %1010 = vmatprep.subr.mxu0 0.0
  %1011 = vmatpush2.msra.mxu0 0.0
  %1012 = vmatprep.subr.mxu0 0.0
  %1013 = vmatpush2.msra.mxu0 0.0
  %1014 = vmatprep.subr.mxu0 0.0
  %1015 = vmatpush2.msra.mxu0 0.0
  %1016 = vmatprep.subr.mxu0 0.0
  %1017 = vmatpush2.msra.mxu0 0.0
  %1018 = vmatprep.subr.mxu0 0.0
  %1019 = vmatpush2.msra.mxu0 0.0
  %1020 = vmatprep.subr.mxu0 0.0
  %1021 = vmatpush2.msra.mxu0 0.0
  %1022 = vmatprep.subr.mxu0 0.0
  %1023 = vmatpush2.msra.mxu0 0.0
  %1024 = vmatprep.subr.mxu0 0.0
  %1025 = vmatpush2.msra.mxu0 0.0
  %1026 = vmatprep.mubr.f32.mxu0 0.0
  %1027 = vmatmul.mubr.f32.gmra.mxu0 %v956
  %v1028 = vpop.f32.mrf.mxu0
  %v1029 = vadd.f32 0.0, %v1028
  %v1030 = vpop.f32.mrf.mxu0
  %v1031 = vadd.f32 0.0, %v1030
  %1032 = vdwg.mxu0
  %1033 = vmatprep.subr.mxu0 %v436
  %1034 = vmatpush1.msra.mxu0 %v435
  %1035 = vmatprep.subr.mxu0 %v432
  %1036 = vmatpush1.msra.mxu0 %v431
  %1037 = vmatprep.subr.mxu0 %v428
  %1038 = vmatpush1.msra.mxu0 %v427
  %1039 = vmatprep.subr.mxu0 %v424
  %1040 = vmatpush1.msra.mxu0 %v423
  %1041 = vmatprep.subr.mxu0 %v420
  %1042 = vmatpush1.msra.mxu0 %v419
  %1043 = vmatprep.subr.mxu0 %v416
  %1044 = vmatpush1.msra.mxu0 %v415
  %1045 = vmatprep.subr.mxu0 %v412
  %1046 = vmatpush1.msra.mxu0 %v411
  %1047 = vmatprep.subr.mxu0 %v408
  %1048 = vmatpush1.msra.mxu0 %v407
  %1049 = vmatprep.subr.mxu0 %v404
  %1050 = vmatpush1.msra.mxu0 %v403
  %1051 = vmatprep.subr.mxu0 %v400
  %1052 = vmatpush1.msra.mxu0 %v399
  %1053 = vmatprep.subr.mxu0 %v396
  %1054 = vmatpush1.msra.mxu0 %v395
  %1055 = vmatprep.subr.mxu0 %v392
  %1056 = vmatpush1.msra.mxu0 %v391
  %1057 = vmatprep.subr.mxu0 %v388
  %1058 = vmatpush1.msra.mxu0 %v387
  %1059 = vmatprep.subr.mxu0 %v384
  %1060 = vmatpush1.msra.mxu0 %v383
  %1061 = vmatprep.subr.mxu0 %v380
  %1062 = vmatpush1.msra.mxu0 %v379
  %1063 = vmatprep.subr.mxu0 %v376
  %1064 = vmatpush1.msra.mxu0 %v375
  %1065 = vmatprep.subr.mxu0 0.0
  %1066 = vmatpush2.msra.mxu0 0.0
  %1067 = vmatprep.subr.mxu0 0.0
  %1068 = vmatpush2.msra.mxu0 0.0
  %1069 = vmatprep.subr.mxu0 0.0
  %1070 = vmatpush2.msra.mxu0 0.0
  %1071 = vmatprep.subr.mxu0 0.0
  %1072 = vmatpush2.msra.mxu0 0.0
  %1073 = vmatprep.subr.mxu0 0.0
  %1074 = vmatpush2.msra.mxu0 0.0
  %1075 = vmatprep.subr.mxu0 0.0
  %1076 = vmatpush2.msra.mxu0 0.0
  %1077 = vmatprep.subr.mxu0 0.0
  %1078 = vmatpush2.msra.mxu0 0.0
  %1079 = vmatprep.subr.mxu0 0.0
  %1080 = vmatpush2.msra.mxu0 0.0
  %1081 = vmatprep.subr.mxu0 0.0
  %1082 = vmatpush2.msra.mxu0 0.0
  %1083 = vmatprep.subr.mxu0 0.0
  %1084 = vmatpush2.msra.mxu0 0.0
  %1085 = vmatprep.subr.mxu0 0.0
  %1086 = vmatpush2.msra.mxu0 0.0
  %1087 = vmatprep.subr.mxu0 0.0
  %1088 = vmatpush2.msra.mxu0 0.0
  %1089 = vmatprep.subr.mxu0 0.0
  %1090 = vmatpush2.msra.mxu0 0.0
  %1091 = vmatprep.subr.mxu0 0.0
  %1092 = vmatpush2.msra.mxu0 0.0
  %1093 = vmatprep.subr.mxu0 0.0
  %1094 = vmatpush2.msra.mxu0 0.0
  %1095 = vmatprep.subr.mxu0 0.0
  %1096 = vmatpush2.msra.mxu0 0.0
  %1097 = vmatprep.mubr.f32.mxu0 0.0
  %1098 = vmatmul.mubr.f32.gmra.mxu0 %v956
  %v1099 = vpop.f32.mrf.mxu0
  %v1100 = vadd.f32 0.0, %v1099
  %v1101 = vpop.f32.mrf.mxu0
  %v1102 = vadd.f32 0.0, %v1101
  %1103 = vdwg.mxu0
  %v1104 = vadd.f32 %v958, %v1029
  %v1105 = vadd.f32 %v959, %v1031
  %v1106 = vadd.f32 %v960, %v1100
  %v1107 = vadd.f32 %v961, %v1102
  %v1108 = vxor.u32 %v1104, 2147483648
  %v1109 = vxor.u32 %v1105, 2147483648
  %v1110 = vxor.u32 %v1106, 2147483648
  %v1111 = vmul.f32 %v1108, 1.442695
  %v1112 = vpow.pop %v1111
  %v1113 = vmul.f32 %v1109, 1.442695
  %v1114 = vpow.pop %v1113
  %v1115 = vmul.f32 %v1110, 1.442695
  %v1116 = vpow.pop %v1115
  %v1117 = vadd.f32 %v1112, 1.0
  %v1118 = vadd.f32 %v1114, 1.0
  %v1119 = vadd.f32 %v1116, 1.0
  %v1120 = vrcp.pop %v1117
  %v1121 = vmul.f32 1.0, %v1120
  %v1122 = vrcp.pop %v1118
  %v1123 = vmul.f32 1.0, %v1122
  %v1124 = vrcp.pop %v1119
  %v1125 = vmul.f32 1.0, %v1124
  %v1126 = vtanh.pop %v1107
  %v1127 = vmul.f32 %v1123, %v954
  %v1128 = vmul.f32 %v1121, %v1126
  %v1129 = vadd.f32 %v1127, %v1128
  %v1130 = vtanh.pop %v1129
  %v1131 = vmul.f32 %v1125, %v1130
  %s1132 = scalar_lea.vmem [#allocation2], 128
  %v1133 = vld [vmem:[%s1132] sm:$0xff]
  %v1134 = vld [vmem:[%s1132 + $0x8] sm:$0xff]
  %v1135 = vld [vmem:[%s1132 + $0x10] sm:$0xff]
  %v1136 = vld [vmem:[%s1132 + $0x18] sm:$0xff]
  %1137 = vmatprep.subr.mxu0 %v434
  %1138 = vmatpush1.msra.mxu0 %v433
  %1139 = vmatprep.subr.mxu0 %v430
  %1140 = vmatpush1.msra.mxu0 %v429
  %1141 = vmatprep.subr.mxu0 %v426
  %1142 = vmatpush1.msra.mxu0 %v425
  %1143 = vmatprep.subr.mxu0 %v422
  %1144 = vmatpush1.msra.mxu0 %v421
  %1145 = vmatprep.subr.mxu0 %v418
  %1146 = vmatpush1.msra.mxu0 %v417
  %1147 = vmatprep.subr.mxu0 %v414
  %1148 = vmatpush1.msra.mxu0 %v413
  %1149 = vmatprep.subr.mxu0 %v410
  %1150 = vmatpush1.msra.mxu0 %v409
  %1151 = vmatprep.subr.mxu0 %v406
  %1152 = vmatpush1.msra.mxu0 %v405
  %1153 = vmatprep.subr.mxu0 %v402
  %1154 = vmatpush1.msra.mxu0 %v401
  %1155 = vmatprep.subr.mxu0 %v398
  %1156 = vmatpush1.msra.mxu0 %v397
  %1157 = vmatprep.subr.mxu0 %v394
  %1158 = vmatpush1.msra.mxu0 %v393
  %1159 = vmatprep.subr.mxu0 %v390
  %1160 = vmatpush1.msra.mxu0 %v389
  %1161 = vmatprep.subr.mxu0 %v386
  %1162 = vmatpush1.msra.mxu0 %v385
  %1163 = vmatprep.subr.mxu0 %v382
  %1164 = vmatpush1.msra.mxu0 %v381
  %1165 = vmatprep.subr.mxu0 %v378
  %1166 = vmatpush1.msra.mxu0 %v377
  %1167 = vmatprep.subr.mxu0 %v374
  %1168 = vmatpush1.msra.mxu0 %v373
  %1169 = vmatprep.subr.mxu0 0.0
  %1170 = vmatpush2.msra.mxu0 0.0
  %1171 = vmatprep.subr.mxu0 0.0
  %1172 = vmatpush2.msra.mxu0 0.0
  %1173 = vmatprep.subr.mxu0 0.0
  %1174 = vmatpush2.msra.mxu0 0.0
  %1175 = vmatprep.subr.mxu0 0.0
  %1176 = vmatpush2.msra.mxu0 0.0
  %1177 = vmatprep.subr.mxu0 0.0
  %1178 = vmatpush2.msra.mxu0 0.0
  %1179 = vmatprep.subr.mxu0 0.0
  %1180 = vmatpush2.msra.mxu0 0.0
  %1181 = vmatprep.subr.mxu0 0.0
  %1182 = vmatpush2.msra.mxu0 0.0
  %1183 = vmatprep.subr.mxu0 0.0
  %1184 = vmatpush2.msra.mxu0 0.0
  %1185 = vmatprep.subr.mxu0 0.0
  %1186 = vmatpush2.msra.mxu0 0.0
  %1187 = vmatprep.subr.mxu0 0.0
  %1188 = vmatpush2.msra.mxu0 0.0
  %1189 = vmatprep.subr.mxu0 0.0
  %1190 = vmatpush2.msra.mxu0 0.0
  %1191 = vmatprep.subr.mxu0 0.0
  %1192 = vmatpush2.msra.mxu0 0.0
  %1193 = vmatprep.subr.mxu0 0.0
  %1194 = vmatpush2.msra.mxu0 0.0
  %1195 = vmatprep.subr.mxu0 0.0
  %1196 = vmatpush2.msra.mxu0 0.0
  %1197 = vmatprep.subr.mxu0 0.0
  %1198 = vmatpush2.msra.mxu0 0.0
  %1199 = vmatprep.subr.mxu0 0.0
  %1200 = vmatpush2.msra.mxu0 0.0
  %1201 = vmatprep.mubr.f32.mxu0 0.0
  %1202 = vmatmul.mubr.f32.gmra.mxu0 %v1131
  %v1203 = vpop.f32.mrf.mxu0
  %v1204 = vadd.f32 0.0, %v1203
  %v1205 = vpop.f32.mrf.mxu0
  %v1206 = vadd.f32 0.0, %v1205
  %1207 = vdwg.mxu0
  %1208 = vmatprep.subr.mxu0 %v436
  %1209 = vmatpush1.msra.mxu0 %v435
  %1210 = vmatprep.subr.mxu0 %v432
  %1211 = vmatpush1.msra.mxu0 %v431
  %1212 = vmatprep.subr.mxu0 %v428
  %1213 = vmatpush1.msra.mxu0 %v427
  %1214 = vmatprep.subr.mxu0 %v424
  %1215 = vmatpush1.msra.mxu0 %v423
  %1216 = vmatprep.subr.mxu0 %v420
  %1217 = vmatpush1.msra.mxu0 %v419
  %1218 = vmatprep.subr.mxu0 %v416
  %1219 = vmatpush1.msra.mxu0 %v415
  %1220 = vmatprep.subr.mxu0 %v412
  %1221 = vmatpush1.msra.mxu0 %v411
  %1222 = vmatprep.subr.mxu0 %v408
  %1223 = vmatpush1.msra.mxu0 %v407
  %1224 = vmatprep.subr.mxu0 %v404
  %1225 = vmatpush1.msra.mxu0 %v403
  %1226 = vmatprep.subr.mxu0 %v400
  %1227 = vmatpush1.msra.mxu0 %v399
  %1228 = vmatprep.subr.mxu0 %v396
  %1229 = vmatpush1.msra.mxu0 %v395
  %1230 = vmatprep.subr.mxu0 %v392
  %1231 = vmatpush1.msra.mxu0 %v391
  %1232 = vmatprep.subr.mxu0 %v388
  %1233 = vmatpush1.msra.mxu0 %v387
  %1234 = vmatprep.subr.mxu0 %v384
  %1235 = vmatpush1.msra.mxu0 %v383
  %1236 = vmatprep.subr.mxu0 %v380
  %1237 = vmatpush1.msra.mxu0 %v379
  %1238 = vmatprep.subr.mxu0 %v376
  %1239 = vmatpush1.msra.mxu0 %v375
  %1240 = vmatprep.subr.mxu0 0.0
  %1241 = vmatpush2.msra.mxu0 0.0
  %1242 = vmatprep.subr.mxu0 0.0
  %1243 = vmatpush2.msra.mxu0 0.0
  %1244 = vmatprep.subr.mxu0 0.0
  %1245 = vmatpush2.msra.mxu0 0.0
  %1246 = vmatprep.subr.mxu0 0.0
  %1247 = vmatpush2.msra.mxu0 0.0
  %1248 = vmatprep.subr.mxu0 0.0
  %1249 = vmatpush2.msra.mxu0 0.0
  %1250 = vmatprep.subr.mxu0 0.0
  %1251 = vmatpush2.msra.mxu0 0.0
  %1252 = vmatprep.subr.mxu0 0.0
  %1253 = vmatpush2.msra.mxu0 0.0
  %1254 = vmatprep.subr.mxu0 0.0
  %1255 = vmatpush2.msra.mxu0 0.0
  %1256 = vmatprep.subr.mxu0 0.0
  %1257 = vmatpush2.msra.mxu0 0.0
  %1258 = vmatprep.subr.mxu0 0.0
  %1259 = vmatpush2.msra.mxu0 0.0
  %1260 = vmatprep.subr.mxu0 0.0
  %1261 = vmatpush2.msra.mxu0 0.0
  %1262 = vmatprep.subr.mxu0 0.0
  %1263 = vmatpush2.msra.mxu0 0.0
  %1264 = vmatprep.subr.mxu0 0.0
  %1265 = vmatpush2.msra.mxu0 0.0
  %1266 = vmatprep.subr.mxu0 0.0
  %1267 = vmatpush2.msra.mxu0 0.0
  %1268 = vmatprep.subr.mxu0 0.0
  %1269 = vmatpush2.msra.mxu0 0.0
  %1270 = vmatprep.subr.mxu0 0.0
  %1271 = vmatpush2.msra.mxu0 0.0
  %1272 = vmatprep.mubr.f32.mxu0 0.0
  %1273 = vmatmul.mubr.f32.gmra.mxu0 %v1131
  %v1274 = vpop.f32.mrf.mxu0
  %v1275 = vadd.f32 0.0, %v1274
  %v1276 = vpop.f32.mrf.mxu0
  %v1277 = vadd.f32 0.0, %v1276
  %1278 = vdwg.mxu0
  %v1279 = vadd.f32 %v1133, %v1204
  %v1280 = vadd.f32 %v1134, %v1206
  %v1281 = vadd.f32 %v1135, %v1275
  %v1282 = vadd.f32 %v1136, %v1277
  %v1283 = vxor.u32 %v1279, 2147483648
  %v1284 = vxor.u32 %v1280, 2147483648
  %v1285 = vxor.u32 %v1281, 2147483648
  %v1286 = vmul.f32 %v1283, 1.442695
  %v1287 = vpow.pop %v1286
  %v1288 = vmul.f32 %v1284, 1.442695
  %v1289 = vpow.pop %v1288
  %v1290 = vmul.f32 %v1285, 1.442695
  %v1291 = vpow.pop %v1290
  %v1292 = vadd.f32 %v1287, 1.0
  %v1293 = vadd.f32 %v1289, 1.0
  %v1294 = vadd.f32 %v1291, 1.0
  %v1295 = vrcp.pop %v1292
  %v1296 = vmul.f32 1.0, %v1295
  %v1297 = vrcp.pop %v1293
  %v1298 = vmul.f32 1.0, %v1297
  %v1299 = vrcp.pop %v1294
  %v1300 = vmul.f32 1.0, %v1299
  %v1301 = vtanh.pop %v1282
  %v1302 = vmul.f32 %v1298, %v1129
  %v1303 = vmul.f32 %v1296, %v1301
  %v1304 = vadd.f32 %v1302, %v1303
  %v1305 = vtanh.pop %v1304
  %v1306 = vmul.f32 %v1300, %v1305
  %s1307 = scalar_lea.vmem [#allocation2], 160
  %v1308 = vld [vmem:[%s1307] sm:$0xff]
  %v1309 = vld [vmem:[%s1307 + $0x8] sm:$0xff]
  %v1310 = vld [vmem:[%s1307 + $0x10] sm:$0xff]
  %v1311 = vld [vmem:[%s1307 + $0x18] sm:$0xff]
  %1312 = vmatprep.subr.mxu0 %v434
  %1313 = vmatpush1.msra.mxu0 %v433
  %1314 = vmatprep.subr.mxu0 %v430
  %1315 = vmatpush1.msra.mxu0 %v429
  %1316 = vmatprep.subr.mxu0 %v426
  %1317 = vmatpush1.msra.mxu0 %v425
  %1318 = vmatprep.subr.mxu0 %v422
  %1319 = vmatpush1.msra.mxu0 %v421
  %1320 = vmatprep.subr.mxu0 %v418
  %1321 = vmatpush1.msra.mxu0 %v417
  %1322 = vmatprep.subr.mxu0 %v414
  %1323 = vmatpush1.msra.mxu0 %v413
  %1324 = vmatprep.subr.mxu0 %v410
  %1325 = vmatpush1.msra.mxu0 %v409
  %1326 = vmatprep.subr.mxu0 %v406
  %1327 = vmatpush1.msra.mxu0 %v405
  %1328 = vmatprep.subr.mxu0 %v402
  %1329 = vmatpush1.msra.mxu0 %v401
  %1330 = vmatprep.subr.mxu0 %v398
  %1331 = vmatpush1.msra.mxu0 %v397
  %1332 = vmatprep.subr.mxu0 %v394
  %1333 = vmatpush1.msra.mxu0 %v393
  %1334 = vmatprep.subr.mxu0 %v390
  %1335 = vmatpush1.msra.mxu0 %v389
  %1336 = vmatprep.subr.mxu0 %v386
  %1337 = vmatpush1.msra.mxu0 %v385
  %1338 = vmatprep.subr.mxu0 %v382
  %1339 = vmatpush1.msra.mxu0 %v381
  %1340 = vmatprep.subr.mxu0 %v378
  %1341 = vmatpush1.msra.mxu0 %v377
  %1342 = vmatprep.subr.mxu0 %v374
  %1343 = vmatpush1.msra.mxu0 %v373
  %1344 = vmatprep.subr.mxu0 0.0
  %1345 = vmatpush2.msra.mxu0 0.0
  %1346 = vmatprep.subr.mxu0 0.0
  %1347 = vmatpush2.msra.mxu0 0.0
  %1348 = vmatprep.subr.mxu0 0.0
  %1349 = vmatpush2.msra.mxu0 0.0
  %1350 = vmatprep.subr.mxu0 0.0
  %1351 = vmatpush2.msra.mxu0 0.0
  %1352 = vmatprep.subr.mxu0 0.0
  %1353 = vmatpush2.msra.mxu0 0.0
  %1354 = vmatprep.subr.mxu0 0.0
  %1355 = vmatpush2.msra.mxu0 0.0
  %1356 = vmatprep.subr.mxu0 0.0
  %1357 = vmatpush2.msra.mxu0 0.0
  %1358 = vmatprep.subr.mxu0 0.0
  %1359 = vmatpush2.msra.mxu0 0.0
  %1360 = vmatprep.subr.mxu0 0.0
  %1361 = vmatpush2.msra.mxu0 0.0
  %1362 = vmatprep.subr.mxu0 0.0
  %1363 = vmatpush2.msra.mxu0 0.0
  %1364 = vmatprep.subr.mxu0 0.0
  %1365 = vmatpush2.msra.mxu0 0.0
  %1366 = vmatprep.subr.mxu0 0.0
  %1367 = vmatpush2.msra.mxu0 0.0
  %1368 = vmatprep.subr.mxu0 0.0
  %1369 = vmatpush2.msra.mxu0 0.0
  %1370 = vmatprep.subr.mxu0 0.0
  %1371 = vmatpush2.msra.mxu0 0.0
  %1372 = vmatprep.subr.mxu0 0.0
  %1373 = vmatpush2.msra.mxu0 0.0
  %1374 = vmatprep.subr.mxu0 0.0
  %1375 = vmatpush2.msra.mxu0 0.0
  %1376 = vmatprep.mubr.f32.mxu0 0.0
  %1377 = vmatmul.mubr.f32.gmra.mxu0 %v1306
  %v1378 = vpop.f32.mrf.mxu0
  %v1379 = vadd.f32 0.0, %v1378
  %v1380 = vpop.f32.mrf.mxu0
  %v1381 = vadd.f32 0.0, %v1380
  %1382 = vdwg.mxu0
  %1383 = vmatprep.subr.mxu0 %v436
  %1384 = vmatpush1.msra.mxu0 %v435
  %1385 = vmatprep.subr.mxu0 %v432
  %1386 = vmatpush1.msra.mxu0 %v431
  %1387 = vmatprep.subr.mxu0 %v428
  %1388 = vmatpush1.msra.mxu0 %v427
  %1389 = vmatprep.subr.mxu0 %v424
  %1390 = vmatpush1.msra.mxu0 %v423
  %1391 = vmatprep.subr.mxu0 %v420
  %1392 = vmatpush1.msra.mxu0 %v419
  %1393 = vmatprep.subr.mxu0 %v416
  %1394 = vmatpush1.msra.mxu0 %v415
  %1395 = vmatprep.subr.mxu0 %v412
  %1396 = vmatpush1.msra.mxu0 %v411
  %1397 = vmatprep.subr.mxu0 %v408
  %1398 = vmatpush1.msra.mxu0 %v407
  %1399 = vmatprep.subr.mxu0 %v404
  %1400 = vmatpush1.msra.mxu0 %v403
  %1401 = vmatprep.subr.mxu0 %v400
  %1402 = vmatpush1.msra.mxu0 %v399
  %1403 = vmatprep.subr.mxu0 %v396
  %1404 = vmatpush1.msra.mxu0 %v395
  %1405 = vmatprep.subr.mxu0 %v392
  %1406 = vmatpush1.msra.mxu0 %v391
  %1407 = vmatprep.subr.mxu0 %v388
  %1408 = vmatpush1.msra.mxu0 %v387
  %1409 = vmatprep.subr.mxu0 %v384
  %1410 = vmatpush1.msra.mxu0 %v383
  %1411 = vmatprep.subr.mxu0 %v380
  %1412 = vmatpush1.msra.mxu0 %v379
  %1413 = vmatprep.subr.mxu0 %v376
  %1414 = vmatpush1.msra.mxu0 %v375
  %1415 = vmatprep.subr.mxu0 0.0
  %1416 = vmatpush2.msra.mxu0 0.0
  %1417 = vmatprep.subr.mxu0 0.0
  %1418 = vmatpush2.msra.mxu0 0.0
  %1419 = vmatprep.subr.mxu0 0.0
  %1420 = vmatpush2.msra.mxu0 0.0
  %1421 = vmatprep.subr.mxu0 0.0
  %1422 = vmatpush2.msra.mxu0 0.0
  %1423 = vmatprep.subr.mxu0 0.0
  %1424 = vmatpush2.msra.mxu0 0.0
  %1425 = vmatprep.subr.mxu0 0.0
  %1426 = vmatpush2.msra.mxu0 0.0
  %1427 = vmatprep.subr.mxu0 0.0
  %1428 = vmatpush2.msra.mxu0 0.0
  %1429 = vmatprep.subr.mxu0 0.0
  %1430 = vmatpush2.msra.mxu0 0.0
  %1431 = vmatprep.subr.mxu0 0.0
  %1432 = vmatpush2.msra.mxu0 0.0
  %1433 = vmatprep.subr.mxu0 0.0
  %1434 = vmatpush2.msra.mxu0 0.0
  %1435 = vmatprep.subr.mxu0 0.0
  %1436 = vmatpush2.msra.mxu0 0.0
  %1437 = vmatprep.subr.mxu0 0.0
  %1438 = vmatpush2.msra.mxu0 0.0
  %1439 = vmatprep.subr.mxu0 0.0
  %1440 = vmatpush2.msra.mxu0 0.0
  %1441 = vmatprep.subr.mxu0 0.0
  %1442 = vmatpush2.msra.mxu0 0.0
  %1443 = vmatprep.subr.mxu0 0.0
  %1444 = vmatpush2.msra.mxu0 0.0
  %1445 = vmatprep.subr.mxu0 0.0
  %1446 = vmatpush2.msra.mxu0 0.0
  %1447 = vmatprep.mubr.f32.mxu0 0.0
  %1448 = vmatmul.mubr.f32.gmra.mxu0 %v1306
  %v1449 = vpop.f32.mrf.mxu0
  %v1450 = vadd.f32 0.0, %v1449
  %v1451 = vpop.f32.mrf.mxu0
  %v1452 = vadd.f32 0.0, %v1451
  %1453 = vdwg.mxu0
  %v1454 = vadd.f32 %v1308, %v1379
  %v1455 = vadd.f32 %v1309, %v1381
  %v1456 = vadd.f32 %v1310, %v1450
  %v1457 = vadd.f32 %v1311, %v1452
  %v1458 = vxor.u32 %v1454, 2147483648
  %v1459 = vxor.u32 %v1455, 2147483648
  %v1460 = vxor.u32 %v1456, 2147483648
  %v1461 = vmul.f32 %v1458, 1.442695
  %v1462 = vpow.pop %v1461
  %v1463 = vmul.f32 %v1459, 1.442695
  %v1464 = vpow.pop %v1463
  %v1465 = vmul.f32 %v1460, 1.442695
  %v1466 = vpow.pop %v1465
  %v1467 = vadd.f32 %v1462, 1.0
  %v1468 = vadd.f32 %v1464, 1.0
  %v1469 = vadd.f32 %v1466, 1.0
  %v1470 = vrcp.pop %v1467
  %v1471 = vmul.f32 1.0, %v1470
  %v1472 = vrcp.pop %v1468
  %v1473 = vmul.f32 1.0, %v1472
  %v1474 = vrcp.pop %v1469
  %v1475 = vmul.f32 1.0, %v1474
  %v1476 = vtanh.pop %v1457
  %v1477 = vmul.f32 %v1473, %v1304
  %v1478 = vmul.f32 %v1471, %v1476
  %v1479 = vadd.f32 %v1477, %v1478
  %v1480 = vtanh.pop %v1479
  %v1481 = vmul.f32 %v1475, %v1480
  %s1482 = scalar_lea.vmem [#allocation2], 192
  %v1483 = vld [vmem:[%s1482] sm:$0xff]
  %v1484 = vld [vmem:[%s1482 + $0x8] sm:$0xff]
  %v1485 = vld [vmem:[%s1482 + $0x10] sm:$0xff]
  %v1486 = vld [vmem:[%s1482 + $0x18] sm:$0xff]
  %1487 = vmatprep.subr.mxu0 %v434
  %1488 = vmatpush1.msra.mxu0 %v433
  %1489 = vmatprep.subr.mxu0 %v430
  %1490 = vmatpush1.msra.mxu0 %v429
  %1491 = vmatprep.subr.mxu0 %v426
  %1492 = vmatpush1.msra.mxu0 %v425
  %1493 = vmatprep.subr.mxu0 %v422
  %1494 = vmatpush1.msra.mxu0 %v421
  %1495 = vmatprep.subr.mxu0 %v418
  %1496 = vmatpush1.msra.mxu0 %v417
  %1497 = vmatprep.subr.mxu0 %v414
  %1498 = vmatpush1.msra.mxu0 %v413
  %1499 = vmatprep.subr.mxu0 %v410
  %1500 = vmatpush1.msra.mxu0 %v409
  %1501 = vmatprep.subr.mxu0 %v406
  %1502 = vmatpush1.msra.mxu0 %v405
  %1503 = vmatprep.subr.mxu0 %v402
  %1504 = vmatpush1.msra.mxu0 %v401
  %1505 = vmatprep.subr.mxu0 %v398
  %1506 = vmatpush1.msra.mxu0 %v397
  %1507 = vmatprep.subr.mxu0 %v394
  %1508 = vmatpush1.msra.mxu0 %v393
  %1509 = vmatprep.subr.mxu0 %v390
  %1510 = vmatpush1.msra.mxu0 %v389
  %1511 = vmatprep.subr.mxu0 %v386
  %1512 = vmatpush1.msra.mxu0 %v385
  %1513 = vmatprep.subr.mxu0 %v382
  %1514 = vmatpush1.msra.mxu0 %v381
  %1515 = vmatprep.subr.mxu0 %v378
  %1516 = vmatpush1.msra.mxu0 %v377
  %1517 = vmatprep.subr.mxu0 %v374
  %1518 = vmatpush1.msra.mxu0 %v373
  %1519 = vmatprep.subr.mxu0 0.0
  %1520 = vmatpush2.msra.mxu0 0.0
  %1521 = vmatprep.subr.mxu0 0.0
  %1522 = vmatpush2.msra.mxu0 0.0
  %1523 = vmatprep.subr.mxu0 0.0
  %1524 = vmatpush2.msra.mxu0 0.0
  %1525 = vmatprep.subr.mxu0 0.0
  %1526 = vmatpush2.msra.mxu0 0.0
  %1527 = vmatprep.subr.mxu0 0.0
  %1528 = vmatpush2.msra.mxu0 0.0
  %1529 = vmatprep.subr.mxu0 0.0
  %1530 = vmatpush2.msra.mxu0 0.0
  %1531 = vmatprep.subr.mxu0 0.0
  %1532 = vmatpush2.msra.mxu0 0.0
  %1533 = vmatprep.subr.mxu0 0.0
  %1534 = vmatpush2.msra.mxu0 0.0
  %1535 = vmatprep.subr.mxu0 0.0
  %1536 = vmatpush2.msra.mxu0 0.0
  %1537 = vmatprep.subr.mxu0 0.0
  %1538 = vmatpush2.msra.mxu0 0.0
  %1539 = vmatprep.subr.mxu0 0.0
  %1540 = vmatpush2.msra.mxu0 0.0
  %1541 = vmatprep.subr.mxu0 0.0
  %1542 = vmatpush2.msra.mxu0 0.0
  %1543 = vmatprep.subr.mxu0 0.0
  %1544 = vmatpush2.msra.mxu0 0.0
  %1545 = vmatprep.subr.mxu0 0.0
  %1546 = vmatpush2.msra.mxu0 0.0
  %1547 = vmatprep.subr.mxu0 0.0
  %1548 = vmatpush2.msra.mxu0 0.0
  %1549 = vmatprep.subr.mxu0 0.0
  %1550 = vmatpush2.msra.mxu0 0.0
  %1551 = vmatprep.mubr.f32.mxu0 0.0
  %1552 = vmatmul.mubr.f32.gmra.mxu0 %v1481
  %v1553 = vpop.f32.mrf.mxu0
  %v1554 = vadd.f32 0.0, %v1553
  %v1555 = vpop.f32.mrf.mxu0
  %v1556 = vadd.f32 0.0, %v1555
  %1557 = vdwg.mxu0
  %1558 = vmatprep.subr.mxu0 %v436
  %1559 = vmatpush1.msra.mxu0 %v435
  %1560 = vmatprep.subr.mxu0 %v432
  %1561 = vmatpush1.msra.mxu0 %v431
  %1562 = vmatprep.subr.mxu0 %v428
  %1563 = vmatpush1.msra.mxu0 %v427
  %1564 = vmatprep.subr.mxu0 %v424
  %1565 = vmatpush1.msra.mxu0 %v423
  %1566 = vmatprep.subr.mxu0 %v420
  %1567 = vmatpush1.msra.mxu0 %v419
  %1568 = vmatprep.subr.mxu0 %v416
  %1569 = vmatpush1.msra.mxu0 %v415
  %1570 = vmatprep.subr.mxu0 %v412
  %1571 = vmatpush1.msra.mxu0 %v411
  %1572 = vmatprep.subr.mxu0 %v408
  %1573 = vmatpush1.msra.mxu0 %v407
  %1574 = vmatprep.subr.mxu0 %v404
  %1575 = vmatpush1.msra.mxu0 %v403
  %1576 = vmatprep.subr.mxu0 %v400
  %1577 = vmatpush1.msra.mxu0 %v399
  %1578 = vmatprep.subr.mxu0 %v396
  %1579 = vmatpush1.msra.mxu0 %v395
  %1580 = vmatprep.subr.mxu0 %v392
  %1581 = vmatpush1.msra.mxu0 %v391
  %1582 = vmatprep.subr.mxu0 %v388
  %1583 = vmatpush1.msra.mxu0 %v387
  %1584 = vmatprep.subr.mxu0 %v384
  %1585 = vmatpush1.msra.mxu0 %v383
  %1586 = vmatprep.subr.mxu0 %v380
  %1587 = vmatpush1.msra.mxu0 %v379
  %1588 = vmatprep.subr.mxu0 %v376
  %1589 = vmatpush1.msra.mxu0 %v375
  %1590 = vmatprep.subr.mxu0 0.0
  %1591 = vmatpush2.msra.mxu0 0.0
  %1592 = vmatprep.subr.mxu0 0.0
  %1593 = vmatpush2.msra.mxu0 0.0
  %1594 = vmatprep.subr.mxu0 0.0
  %1595 = vmatpush2.msra.mxu0 0.0
  %1596 = vmatprep.subr.mxu0 0.0
  %1597 = vmatpush2.msra.mxu0 0.0
  %1598 = vmatprep.subr.mxu0 0.0
  %1599 = vmatpush2.msra.mxu0 0.0
  %1600 = vmatprep.subr.mxu0 0.0
  %1601 = vmatpush2.msra.mxu0 0.0
  %1602 = vmatprep.subr.mxu0 0.0
  %1603 = vmatpush2.msra.mxu0 0.0
  %1604 = vmatprep.subr.mxu0 0.0
  %1605 = vmatpush2.msra.mxu0 0.0
  %1606 = vmatprep.subr.mxu0 0.0
  %1607 = vmatpush2.msra.mxu0 0.0
  %1608 = vmatprep.subr.mxu0 0.0
  %1609 = vmatpush2.msra.mxu0 0.0
  %1610 = vmatprep.subr.mxu0 0.0
  %1611 = vmatpush2.msra.mxu0 0.0
  %1612 = vmatprep.subr.mxu0 0.0
  %1613 = vmatpush2.msra.mxu0 0.0
  %1614 = vmatprep.subr.mxu0 0.0
  %1615 = vmatpush2.msra.mxu0 0.0
  %1616 = vmatprep.subr.mxu0 0.0
  %1617 = vmatpush2.msra.mxu0 0.0
  %1618 = vmatprep.subr.mxu0 0.0
  %1619 = vmatpush2.msra.mxu0 0.0
  %1620 = vmatprep.subr.mxu0 0.0
  %1621 = vmatpush2.msra.mxu0 0.0
  %1622 = vmatprep.mubr.f32.mxu0 0.0
  %1623 = vmatmul.mubr.f32.gmra.mxu0 %v1481
  %v1624 = vpop.f32.mrf.mxu0
  %v1625 = vadd.f32 0.0, %v1624
  %v1626 = vpop.f32.mrf.mxu0
  %v1627 = vadd.f32 0.0, %v1626
  %1628 = vdwg.mxu0
  %v1629 = vadd.f32 %v1483, %v1554
  %v1630 = vadd.f32 %v1484, %v1556
  %v1631 = vadd.f32 %v1485, %v1625
  %v1632 = vadd.f32 %v1486, %v1627
  %v1633 = vxor.u32 %v1629, 2147483648
  %v1634 = vxor.u32 %v1630, 2147483648
  %v1635 = vxor.u32 %v1631, 2147483648
  %v1636 = vmul.f32 %v1633, 1.442695
  %v1637 = vpow.pop %v1636
  %v1638 = vmul.f32 %v1634, 1.442695
  %v1639 = vpow.pop %v1638
  %v1640 = vmul.f32 %v1635, 1.442695
  %v1641 = vpow.pop %v1640
  %v1642 = vadd.f32 %v1637, 1.0
  %v1643 = vadd.f32 %v1639, 1.0
  %v1644 = vadd.f32 %v1641, 1.0
  %v1645 = vrcp.pop %v1642
  %v1646 = vmul.f32 1.0, %v1645
  %v1647 = vrcp.pop %v1643
  %v1648 = vmul.f32 1.0, %v1647
  %v1649 = vrcp.pop %v1644
  %v1650 = vmul.f32 1.0, %v1649
  %v1651 = vtanh.pop %v1632
  %v1652 = vmul.f32 %v1648, %v1479
  %v1653 = vmul.f32 %v1646, %v1651
  %v1654 = vadd.f32 %v1652, %v1653
  %v1655 = vtanh.pop %v1654
  %v1656 = vmul.f32 %v1650, %v1655
  %s1657 = scalar_lea.vmem [#allocation2], 224
  %v1658 = vld [vmem:[%s1657] sm:$0xff]
  %v1659 = vld [vmem:[%s1657 + $0x8] sm:$0xff]
  %v1660 = vld [vmem:[%s1657 + $0x10] sm:$0xff]
  %v1661 = vld [vmem:[%s1657 + $0x18] sm:$0xff]
  %1662 = vmatprep.subr.mxu0 %v434
  %1663 = vmatpush1.msra.mxu0 %v433
  %1664 = vmatprep.subr.mxu0 %v430
  %1665 = vmatpush1.msra.mxu0 %v429
  %1666 = vmatprep.subr.mxu0 %v426
  %1667 = vmatpush1.msra.mxu0 %v425
  %1668 = vmatprep.subr.mxu0 %v422
  %1669 = vmatpush1.msra.mxu0 %v421
  %1670 = vmatprep.subr.mxu0 %v418
  %1671 = vmatpush1.msra.mxu0 %v417
  %1672 = vmatprep.subr.mxu0 %v414
  %1673 = vmatpush1.msra.mxu0 %v413
  %1674 = vmatprep.subr.mxu0 %v410
  %1675 = vmatpush1.msra.mxu0 %v409
  %1676 = vmatprep.subr.mxu0 %v406
  %1677 = vmatpush1.msra.mxu0 %v405
  %1678 = vmatprep.subr.mxu0 %v402
  %1679 = vmatpush1.msra.mxu0 %v401
  %1680 = vmatprep.subr.mxu0 %v398
  %1681 = vmatpush1.msra.mxu0 %v397
  %1682 = vmatprep.subr.mxu0 %v394
  %1683 = vmatpush1.msra.mxu0 %v393
  %1684 = vmatprep.subr.mxu0 %v390
  %1685 = vmatpush1.msra.mxu0 %v389
  %1686 = vmatprep.subr.mxu0 %v386
  %1687 = vmatpush1.msra.mxu0 %v385
  %1688 = vmatprep.subr.mxu0 %v382
  %1689 = vmatpush1.msra.mxu0 %v381
  %1690 = vmatprep.subr.mxu0 %v378
  %1691 = vmatpush1.msra.mxu0 %v377
  %1692 = vmatprep.subr.mxu0 %v374
  %1693 = vmatpush1.msra.mxu0 %v373
  %1694 = vmatprep.subr.mxu0 0.0
  %1695 = vmatpush2.msra.mxu0 0.0
  %1696 = vmatprep.subr.mxu0 0.0
  %1697 = vmatpush2.msra.mxu0 0.0
  %1698 = vmatprep.subr.mxu0 0.0
  %1699 = vmatpush2.msra.mxu0 0.0
  %1700 = vmatprep.subr.mxu0 0.0
  %1701 = vmatpush2.msra.mxu0 0.0
  %1702 = vmatprep.subr.mxu0 0.0
  %1703 = vmatpush2.msra.mxu0 0.0
  %1704 = vmatprep.subr.mxu0 0.0
  %1705 = vmatpush2.msra.mxu0 0.0
  %1706 = vmatprep.subr.mxu0 0.0
  %1707 = vmatpush2.msra.mxu0 0.0
  %1708 = vmatprep.subr.mxu0 0.0
  %1709 = vmatpush2.msra.mxu0 0.0
  %1710 = vmatprep.subr.mxu0 0.0
  %1711 = vmatpush2.msra.mxu0 0.0
  %1712 = vmatprep.subr.mxu0 0.0
  %1713 = vmatpush2.msra.mxu0 0.0
  %1714 = vmatprep.subr.mxu0 0.0
  %1715 = vmatpush2.msra.mxu0 0.0
  %1716 = vmatprep.subr.mxu0 0.0
  %1717 = vmatpush2.msra.mxu0 0.0
  %1718 = vmatprep.subr.mxu0 0.0
  %1719 = vmatpush2.msra.mxu0 0.0
  %1720 = vmatprep.subr.mxu0 0.0
  %1721 = vmatpush2.msra.mxu0 0.0
  %1722 = vmatprep.subr.mxu0 0.0
  %1723 = vmatpush2.msra.mxu0 0.0
  %1724 = vmatprep.subr.mxu0 0.0
  %1725 = vmatpush2.msra.mxu0 0.0
  %1726 = vmatprep.mubr.f32.mxu0 0.0
  %1727 = vmatmul.mubr.f32.gmra.mxu0 %v1656
  %v1728 = vpop.f32.mrf.mxu0
  %v1729 = vadd.f32 0.0, %v1728
  %v1730 = vpop.f32.mrf.mxu0
  %v1731 = vadd.f32 0.0, %v1730
  %1732 = vdwg.mxu0
  %1733 = vmatprep.subr.mxu0 %v436
  %1734 = vmatpush1.msra.mxu0 %v435
  %1735 = vmatprep.subr.mxu0 %v432
  %1736 = vmatpush1.msra.mxu0 %v431
  %1737 = vmatprep.subr.mxu0 %v428
  %1738 = vmatpush1.msra.mxu0 %v427
  %1739 = vmatprep.subr.mxu0 %v424
  %1740 = vmatpush1.msra.mxu0 %v423
  %1741 = vmatprep.subr.mxu0 %v420
  %1742 = vmatpush1.msra.mxu0 %v419
  %1743 = vmatprep.subr.mxu0 %v416
  %1744 = vmatpush1.msra.mxu0 %v415
  %1745 = vmatprep.subr.mxu0 %v412
  %1746 = vmatpush1.msra.mxu0 %v411
  %1747 = vmatprep.subr.mxu0 %v408
  %1748 = vmatpush1.msra.mxu0 %v407
  %1749 = vmatprep.subr.mxu0 %v404
  %1750 = vmatpush1.msra.mxu0 %v403
  %1751 = vmatprep.subr.mxu0 %v400
  %1752 = vmatpush1.msra.mxu0 %v399
  %1753 = vmatprep.subr.mxu0 %v396
  %1754 = vmatpush1.msra.mxu0 %v395
  %1755 = vmatprep.subr.mxu0 %v392
  %1756 = vmatpush1.msra.mxu0 %v391
  %1757 = vmatprep.subr.mxu0 %v388
  %1758 = vmatpush1.msra.mxu0 %v387
  %1759 = vmatprep.subr.mxu0 %v384
  %1760 = vmatpush1.msra.mxu0 %v383
  %1761 = vmatprep.subr.mxu0 %v380
  %1762 = vmatpush1.msra.mxu0 %v379
  %1763 = vmatprep.subr.mxu0 %v376
  %1764 = vmatpush1.msra.mxu0 %v375
  %1765 = vmatprep.subr.mxu0 0.0
  %1766 = vmatpush2.msra.mxu0 0.0
  %1767 = vmatprep.subr.mxu0 0.0
  %1768 = vmatpush2.msra.mxu0 0.0
  %1769 = vmatprep.subr.mxu0 0.0
  %1770 = vmatpush2.msra.mxu0 0.0
  %1771 = vmatprep.subr.mxu0 0.0
  %1772 = vmatpush2.msra.mxu0 0.0
  %1773 = vmatprep.subr.mxu0 0.0
  %1774 = vmatpush2.msra.mxu0 0.0
  %1775 = vmatprep.subr.mxu0 0.0
  %1776 = vmatpush2.msra.mxu0 0.0
  %1777 = vmatprep.subr.mxu0 0.0
  %1778 = vmatpush2.msra.mxu0 0.0
  %1779 = vmatprep.subr.mxu0 0.0
  %1780 = vmatpush2.msra.mxu0 0.0
  %1781 = vmatprep.subr.mxu0 0.0
  %1782 = vmatpush2.msra.mxu0 0.0
  %1783 = vmatprep.subr.mxu0 0.0
  %1784 = vmatpush2.msra.mxu0 0.0
  %1785 = vmatprep.subr.mxu0 0.0
  %1786 = vmatpush2.msra.mxu0 0.0
  %1787 = vmatprep.subr.mxu0 0.0
  %1788 = vmatpush2.msra.mxu0 0.0
  %1789 = vmatprep.subr.mxu0 0.0
  %1790 = vmatpush2.msra.mxu0 0.0
  %1791 = vmatprep.subr.mxu0 0.0
  %1792 = vmatpush2.msra.mxu0 0.0
  %1793 = vmatprep.subr.mxu0 0.0
  %1794 = vmatpush2.msra.mxu0 0.0
  %1795 = vmatprep.subr.mxu0 0.0
  %1796 = vmatpush2.msra.mxu0 0.0
  %1797 = vmatprep.mubr.f32.mxu0 0.0
  %1798 = vmatmul.mubr.f32.gmra.mxu0 %v1656
  %v1799 = vpop.f32.mrf.mxu0
  %v1800 = vadd.f32 0.0, %v1799
  %v1801 = vpop.f32.mrf.mxu0
  %v1802 = vadd.f32 0.0, %v1801
  %1803 = vdwg.mxu0
  %v1804 = vadd.f32 %v1658, %v1729
  %v1805 = vadd.f32 %v1659, %v1731
  %v1806 = vadd.f32 %v1660, %v1800
  %v1807 = vadd.f32 %v1661, %v1802
  %v1808 = vxor.u32 %v1804, 2147483648
  %v1809 = vxor.u32 %v1805, 2147483648
  %v1810 = vxor.u32 %v1806, 2147483648
  %v1811 = vmul.f32 %v1808, 1.442695
  %v1812 = vpow.pop %v1811
  %v1813 = vmul.f32 %v1809, 1.442695
  %v1814 = vpow.pop %v1813
  %v1815 = vmul.f32 %v1810, 1.442695
  %v1816 = vpow.pop %v1815
  %v1817 = vadd.f32 %v1812, 1.0
  %v1818 = vadd.f32 %v1814, 1.0
  %v1819 = vadd.f32 %v1816, 1.0
  %v1820 = vrcp.pop %v1817
  %v1821 = vmul.f32 1.0, %v1820
  %v1822 = vrcp.pop %v1818
  %v1823 = vmul.f32 1.0, %v1822
  %v1824 = vrcp.pop %v1819
  %v1825 = vmul.f32 1.0, %v1824
  %v1826 = vtanh.pop %v1807
  %v1827 = vmul.f32 %v1823, %v1654
  %v1828 = vmul.f32 %v1821, %v1826
  %v1829 = vadd.f32 %v1827, %v1828
  %v1830 = vtanh.pop %v1829
  %v1831 = vmul.f32 %v1825, %v1830
  %1832 = vst [vmem:[%s4] sm:$0xff] %v1831
  // Predicated region
  $region18: #{lstm_model_forward.1} parent=0 // pred_check
    _
  $region19: #{lstm_model_forward.1} parent=0 // pred_check_branch
    %1834 = sbr.rel (0) target = $region21
  $region20: #{lstm_model_forward.1} parent=0 // pred_region
    _
  $region21: #{lstm_model_forward.1} parent=0 // pred_fallthru
    _
  // Predicated region
  $region22: #{lstm_model_forward.1} parent=0 // pred_check
    _
  $region23: #{lstm_model_forward.1} parent=0 // pred_check_branch
    %1836 = sbr.rel (0) target = $region25
  $region24: #{lstm_model_forward.1} parent=0 // pred_region
    _
  $region25: #{lstm_model_forward.1} parent=0 // pred_fallthru
    _

</llo_original>
